<compile_context>
chip_gen: v6e
topology: v6e:2x2x1
jax: 0.10.0
libtpu: 0.0.40
codegen_flags: <defaults>
</compile_context>

<pallas_src>
import jax
import jax.numpy as jnp
import numpy as np
from jax import lax
from jax.experimental import pallas as pl
from jax.experimental.pallas import tpu as pltpu


def lstm_kernel(x_ref, wih0_ref, whh0_ref, b0_ref,
                wih_r_ref, whh_r_ref, b_r_ref,
                wfc_ref, bfc_ref, out_ref, pre_scr, seq_scr):
    Bp = out_ref.shape[0]              # padded batch (multiple of 8)
    TB = x_ref.shape[0]                # T * Bp
    T = TB // Bp
    H = whh0_ref.shape[0]
    L_rest = wih_r_ref.shape[0]

    zeros = jnp.zeros((Bp, H), jnp.float32)
    unroll = min(T, 8)                 # partial unroll: overlap w/o code blowup

    def recurrence(whh, store_seq):
        # Gate columns arrive pre-permuted as [i, f, o, g]: sigmoid only on
        # the first 3H lanes, tanh only on the last H lanes (half the EUP
        # work of sigmoid+tanh over the whole 4H slab).
        def step(t, carry):
            h, c = carry
            row = pl.multiple_of(t * Bp, Bp)
            gates = (pre_scr[pl.ds(row, Bp), :]
                     + jnp.dot(h.astype(jnp.bfloat16), whh,
                               preferred_element_type=jnp.float32))
            sg = jax.nn.sigmoid(gates[:, 0:3 * H])     # [i | f | o]
            g_g = jnp.tanh(gates[:, 3 * H:4 * H])      # candidate
            i_g = sg[:, 0 * H:1 * H]
            f_g = sg[:, 1 * H:2 * H]
            o_g = sg[:, 2 * H:3 * H]
            c_new = f_g * c + i_g * g_g
            h_new = o_g * jnp.tanh(c_new)
            if store_seq:              # compile-time const; skipped on last layer
                seq_scr[pl.ds(row, Bp), :] = h_new.astype(seq_scr.dtype)
            return (h_new, c_new)

        return lax.fori_loop(0, T, step, (zeros, zeros), unroll=unroll)

    # ---- Layer 0: whole-sequence input GEMM, bf16 operands / f32 accumulate,
    # bias (b_ih + b_hh) folded in.
    pre_scr[...] = (jnp.dot(x_ref[...], wih0_ref[...],
                            preferred_element_type=jnp.float32)
                    + b0_ref[...])
    h, c = recurrence(whh0_ref[...], store_seq=(L_rest > 0))

    # ---- Layers 1..L-1: previous layer's hidden sequence (bf16) feeds one
    # big GEMM producing the next layer's pre-activations, then recur.
    # TODO(synk): inter-layer dropout of nn.LSTM is training-only; eval-mode
    # forward (no dropout) is what is implemented here.
    # TODO(synk): for deep stacks / large H, stream per-layer weights from HBM
    # with double-buffered make_async_copy and hold W_hh in MXU weight regs
    # via matmul_push_rhs across the time loop.
    # TODO(synk): for realistic T*H on v7x (64 MiB VMEM), time-chunk
    # pre_scr/seq_scr and stream chunks (emit_pipeline) instead of holding the
    # full sequence resident.
    for l in range(L_rest):
        pre_scr[...] = (jnp.dot(seq_scr[...], wih_r_ref[l],
                                preferred_element_type=jnp.float32)
                        + b_r_ref[l])
        h, c = recurrence(whh_r_ref[l], store_seq=(l < L_rest - 1))

    # ---- fc head on the last time step: VPU multiply + lane reduction.
    out_ref[...] = (jnp.sum(h * wfc_ref[...], axis=-1, keepdims=True)
                    + bfc_ref[...])


def lstm_model_forward(x, params):
    """x: (B, T, I) float32 (batch_first, like the PyTorch module).

    params are in PyTorch gate order [i, f, g, o]; this wrapper permutes the
    gate columns to [i, f, o, g] and casts MXU operands to bf16.
    """
    B, T, I = x.shape
    H = params["whh0"].shape[0]
    Bp = max(8, ((B + 7) // 8) * 8)    # pad batch to sublane width

    # Permute gate columns: [i, f, g, o] -> [i, f, o, g].
    perm = jnp.concatenate([jnp.arange(0, 2 * H),
                            jnp.arange(3 * H, 4 * H),
                            jnp.arange(2 * H, 3 * H)])

    def pg(w):
        return jnp.take(w, perm, axis=-1)

    wih0 = pg(params["wih0"]).astype(jnp.bfloat16)
    whh0 = pg(params["whh0"]).astype(jnp.bfloat16)
    b0 = pg(params["b0"]).astype(jnp.float32)
    wih_r = pg(params["wih_r"]).astype(jnp.bfloat16)
    whh_r = pg(params["whh_r"]).astype(jnp.bfloat16)
    b_r = pg(params["b_r"]).astype(jnp.float32)
    wfc_row = jnp.transpose(params["wfc"]).astype(jnp.float32)   # (1, H)
    bfc = params["bfc"].astype(jnp.float32)

    x_tm = jnp.transpose(x, (1, 0, 2))                            # (T, B, I)
    if Bp != B:
        x_tm = jnp.pad(x_tm, ((0, 0), (0, Bp - B), (0, 0)))
    x_flat = x_tm.reshape(T * Bp, I).astype(jnp.bfloat16)         # (T*Bp, I)

    # VMEM budget derived from actual residency (+50% headroom), clamped.
    L_rest = params["wih_r"].shape[0]
    resident = (T * Bp * I * 2                                    # x (bf16)
                + (I + H) * 4 * H * 2 + 4 * H * 4                 # layer-0 w/b
                + L_rest * (2 * H * 4 * H * 2 + 4 * H * 4)        # rest w/b
                + H * 4 + 4 + Bp * 4                              # fc + out
                + T * Bp * 4 * H * 4                              # pre_scr f32
                + T * Bp * H * 2)                                 # seq_scr bf16
    vmem_limit = int(min(100 * 2**20, max(16 * 2**20, 1.5 * resident)))

    vmem = pl.BlockSpec(memory_space=pltpu.MemorySpace.VMEM)
    # TODO(synk): on v7x, split the padded batch across the two TensorCores
    # with a grid=(2,) "parallel" axis once Bp >= 16 (no-op on v5e/v6e).
    out = pl.pallas_call(
        lstm_kernel,
        out_shape=jax.ShapeDtypeStruct((Bp, 1), jnp.float32),
        in_specs=[vmem] * 9,
        out_specs=vmem,
        scratch_shapes=[pltpu.VMEM((T * Bp, 4 * H), jnp.float32),  # pre-acts
                        pltpu.VMEM((T * Bp, H), jnp.bfloat16)],    # hidden seq
        compiler_params=pltpu.CompilerParams(vmem_limit_bytes=vmem_limit),
    )(x_flat, wih0, whh0, b0, wih_r, whh_r, b_r, wfc_row, bfc)
    return out[:B]


def lstm_model_ref(x, params):
    """Pure-JAX f32 reference implementing the same forward semantics
    (PyTorch gate order [i, f, g, o])."""
    H = params["whh0"].shape[0]
    B = x.shape[0]

    def run_layer(seq, wih, whh, b):
        def step(carry, xt):
            h, c = carry
            gates = xt @ wih + h @ whh + b
            i_g = jax.nn.sigmoid(gates[:, 0 * H:1 * H])
            f_g = jax.nn.sigmoid(gates[:, 1 * H:2 * H])
            g_g = jnp.tanh(gates[:, 2 * H:3 * H])
            o_g = jax.nn.sigmoid(gates[:, 3 * H:4 * H])
            c_new = f_g * c + i_g * g_g
            h_new = o_g * jnp.tanh(c_new)
            return (h_new, c_new), h_new

        z = jnp.zeros((B, H), jnp.float32)
        (h, _), hs = lax.scan(step, (z, z), jnp.transpose(seq, (1, 0, 2)))
        return jnp.transpose(hs, (1, 0, 2)), h

    seq, h = run_layer(x, params["wih0"], params["whh0"], params["b0"][0])
    for l in range(params["wih_r"].shape[0]):
        seq, h = run_layer(seq, params["wih_r"][l], params["whh_r"][l],
                           params["b_r"][l, 0])
    return h @ params["wfc"] + params["bfc"]


def init_params(key, input_size, hidden_size, num_layers):
    """Deterministic PyTorch-style init: U(-1/sqrt(H), 1/sqrt(H)),
    gate order [i, f, g, o], biases pre-summed (b_ih + b_hh)."""
    k = 1.0 / np.sqrt(hidden_size)
    H4 = 4 * hidden_size
    keys = jax.random.split(key, 6 * num_layers + 2)

    def u(kk, shape):
        return jax.random.uniform(kk, shape, jnp.float32, -k, k)

    # layer 0
    wih0 = u(keys[0], (input_size, H4))
    whh0 = u(keys[1], (hidden_size, H4))
    b0 = (u(keys[2], (1, H4)) + u(keys[3], (1, H4)))

    # layers 1..L-1 (stacked)
    wih_r, whh_r, b_r = [], [], []
    for l in range(1, num_layers):
        base = 4 + 6 * (l - 1)
        wih_r.append(u(keys[base + 0], (hidden_size, H4)))
        whh_r.append(u(keys[base + 1], (hidden_size, H4)))
        b_r.append(u(keys[base + 2], (1, H4)) + u(keys[base + 3], (1, H4)))
    wih_r = jnp.stack(wih_r)            # (L-1, H, 4H)
    whh_r = jnp.stack(whh_r)            # (L-1, H, 4H)
    b_r = jnp.stack(b_r)                # (L-1, 1, 4H)

    wfc = u(keys[-2], (hidden_size, 1))
    bfc = u(keys[-1], (1, 1))
    return dict(wih0=wih0, whh0=whh0, b0=b0,
                wih_r=wih_r, whh_r=whh_r, b_r=b_r,
                wfc=wfc, bfc=bfc)


if __name__ == "__main__":
    # Small shapes consistent with the module's forward:
    # batch=2, seq_len=8, input_size=16, hidden_size=32, num_layers=2
    B, T, I, H, L = 2, 8, 16, 32, 2

    root = jax.random.PRNGKey(0)
    kx, kp = jax.random.split(root)
    x = jax.random.normal(kx, (B, T, I), jnp.float32)
    params = init_params(kp, I, H, L)

    out = jax.block_until_ready(lstm_model_forward(x, params))
    ref = jax.block_until_ready(lstm_model_ref(x, params))

    assert out.shape == (B, 1), out.shape
    # bf16 MXU operands -> loosened tolerance vs. f32 reference.
    np.testing.assert_allclose(np.asarray(out), np.asarray(ref),
                               rtol=1e-2, atol=1e-2)
    print("KERNEL_OK")
</pallas_src>

<mosaic_0001>
module attributes {stable_mosaic.version = 11 : i64} {
  func.func @lstm_kernel(%arg0: memref<64x16xbf16, #tpu.memory_space<vmem>>, %arg1: memref<16x128xbf16, #tpu.memory_space<vmem>>, %arg2: memref<32x128xbf16, #tpu.memory_space<vmem>>, %arg3: memref<1x128xf32, #tpu.memory_space<vmem>>, %arg4: memref<1x32x128xbf16, #tpu.memory_space<vmem>>, %arg5: memref<1x32x128xbf16, #tpu.memory_space<vmem>>, %arg6: memref<1x1x128xf32, #tpu.memory_space<vmem>>, %arg7: memref<1x32xf32, #tpu.memory_space<vmem>>, %arg8: memref<1x1xf32, #tpu.memory_space<vmem>>, %arg9: memref<8x1xf32, #tpu.memory_space<vmem>>, %arg10: memref<64x128xf32, #tpu.memory_space<vmem>>, %arg11: memref<64x32xbf16, #tpu.memory_space<vmem>>) attributes {dimension_semantics = [], scalar_prefetch = 0 : i64, scratch_operands = 2 : i64, tpu.core_type = #tpu.core_type<tc>} {
    %cst = arith.constant 0.000000e+00 : f32
    %0 = vector.broadcast %cst : f32 to vector<8x32xf32>
    %c0 = arith.constant 0 : index
    %c0_0 = arith.constant 0 : index
    %1 = vector.load %arg0[%c0, %c0_0] : memref<64x16xbf16, #tpu.memory_space<vmem>>, vector<64x16xbf16>
    %c0_1 = arith.constant 0 : index
    %c0_2 = arith.constant 0 : index
    %2 = vector.load %arg1[%c0_1, %c0_2] : memref<16x128xbf16, #tpu.memory_space<vmem>>, vector<16x128xbf16>
    %cst_3 = arith.constant dense<0.000000e+00> : vector<64x128xf32>
    %3 = tpu.matmul %1, %2, %cst_3 {dimension_numbers = #tpu.dot_dimension_numbers<[1], [0], [0], [1], [0, 0, 1, 1], [], []>} : vector<64x16xbf16>, vector<16x128xbf16>, vector<64x128xf32> -> vector<64x128xf32>
    %c0_4 = arith.constant 0 : index
    %c0_5 = arith.constant 0 : index
    %4 = vector.load %arg3[%c0_4, %c0_5] : memref<1x128xf32, #tpu.memory_space<vmem>>, vector<1x128xf32>
    %5 = vector.broadcast %4 : vector<1x128xf32> to vector<64x128xf32>
    %6 = arith.addf %3, %5 : vector<64x128xf32>
    %c0_6 = arith.constant 0 : index
    %c0_7 = arith.constant 0 : index
    %7 = vector.load %arg10[%c0_6, %c0_7] : memref<64x128xf32, #tpu.memory_space<vmem>>, vector<64x128xf32>
    tpu.vector_store %arg10[%c0_6, %c0_7], %6 {strides = array<i32>} : memref<64x128xf32, #tpu.memory_space<vmem>>, vector<64x128xf32>,
    %c0_8 = arith.constant 0 : index
    %c0_9 = arith.constant 0 : index
    %8 = vector.load %arg2[%c0_8, %c0_9] : memref<32x128xbf16, #tpu.memory_space<vmem>>, vector<32x128xbf16>
    %c0_i32 = arith.constant 0 : i32
    %c8_i32 = arith.constant 8 : i32
    %9 = arith.muli %c0_i32, %c8_i32 : i32
    %10 = tpu.assume_multiple %9, 8 : i32
    %11 = arith.index_cast %10 : i32 to index
    %c0_10 = arith.constant 0 : index
    %12 = vector.load %arg10[%11, %c0_10] : memref<64x128xf32, #tpu.memory_space<vmem>>, vector<8x128xf32>
    %13 = arith.truncf %0 : vector<8x32xf32> to vector<8x32xbf16>
    %cst_11 = arith.constant dense<0.000000e+00> : vector<8x128xf32>
    %14 = tpu.matmul %13, %8, %cst_11 {dimension_numbers = #tpu.dot_dimension_numbers<[1], [0], [0], [1], [0, 0, 1, 1], [], []>} : vector<8x32xbf16>, vector<32x128xbf16>, vector<8x128xf32> -> vector<8x128xf32>
    %15 = arith.addf %12, %14 : vector<8x128xf32>
    %16 = vector.extract_strided_slice %15 {offsets = [0, 0], sizes = [8, 96], strides = [1, 1]} : vector<8x128xf32> to vector<8x96xf32>
    %17 = arith.negf %16 : vector<8x96xf32>
    %18 = math.exp %17 : vector<8x96xf32>
    %cst_12 = arith.constant 1.000000e+00 : f32
    %19 = vector.broadcast %cst_12 : f32 to vector<8x96xf32>
    %20 = arith.addf %19, %18 : vector<8x96xf32>
    %21 = arith.divf %19, %20 : vector<8x96xf32>
    %22 = vector.extract_strided_slice %15 {offsets = [0, 96], sizes = [8, 32], strides = [1, 1]} : vector<8x128xf32> to vector<8x32xf32>
    %23 = math.tanh %22 : vector<8x32xf32>
    %24 = vector.extract_strided_slice %21 {offsets = [0, 0], sizes = [8, 32], strides = [1, 1]} : vector<8x96xf32> to vector<8x32xf32>
    %25 = vector.extract_strided_slice %21 {offsets = [0, 32], sizes = [8, 32], strides = [1, 1]} : vector<8x96xf32> to vector<8x32xf32>
    %26 = vector.extract_strided_slice %21 {offsets = [0, 64], sizes = [8, 32], strides = [1, 1]} : vector<8x96xf32> to vector<8x32xf32>
    %27 = arith.mulf %25, %0 : vector<8x32xf32>
    %28 = arith.mulf %24, %23 : vector<8x32xf32>
    %29 = arith.addf %27, %28 : vector<8x32xf32>
    %30 = math.tanh %29 : vector<8x32xf32>
    %31 = arith.mulf %26, %30 : vector<8x32xf32>
    %32 = arith.truncf %31 : vector<8x32xf32> to vector<8x32xbf16>
    %33 = arith.index_cast %10 : i32 to index
    %c0_13 = arith.constant 0 : index
    %34 = vector.load %arg11[%33, %c0_13] : memref<64x32xbf16, #tpu.memory_space<vmem>>, vector<8x32xbf16>
    tpu.vector_store %arg11[%33, %c0_13], %32 {strides = array<i32>} : memref<64x32xbf16, #tpu.memory_space<vmem>>, vector<8x32xbf16>,
    %c1_i32 = arith.constant 1 : i32
    %c8_i32_14 = arith.constant 8 : i32
    %35 = arith.muli %c1_i32, %c8_i32_14 : i32
    %36 = tpu.assume_multiple %35, 8 : i32
    %37 = arith.index_cast %36 : i32 to index
    %c0_15 = arith.constant 0 : index
    %38 = vector.load %arg10[%37, %c0_15] : memref<64x128xf32, #tpu.memory_space<vmem>>, vector<8x128xf32>
    %39 = arith.truncf %31 : vector<8x32xf32> to vector<8x32xbf16>
    %cst_16 = arith.constant dense<0.000000e+00> : vector<8x128xf32>
    %40 = tpu.matmul %39, %8, %cst_16 {dimension_numbers = #tpu.dot_dimension_numbers<[1], [0], [0], [1], [0, 0, 1, 1], [], []>} : vector<8x32xbf16>, vector<32x128xbf16>, vector<8x128xf32> -> vector<8x128xf32>
    %41 = arith.addf %38, %40 : vector<8x128xf32>
    %42 = vector.extract_strided_slice %41 {offsets = [0, 0], sizes = [8, 96], strides = [1, 1]} : vector<8x128xf32> to vector<8x96xf32>
    %43 = arith.negf %42 : vector<8x96xf32>
    %44 = math.exp %43 : vector<8x96xf32>
    %cst_17 = arith.constant 1.000000e+00 : f32
    %45 = vector.broadcast %cst_17 : f32 to vector<8x96xf32>
    %46 = arith.addf %45, %44 : vector<8x96xf32>
    %47 = arith.divf %45, %46 : vector<8x96xf32>
    %48 = vector.extract_strided_slice %41 {offsets = [0, 96], sizes = [8, 32], strides = [1, 1]} : vector<8x128xf32> to vector<8x32xf32>
    %49 = math.tanh %48 : vector<8x32xf32>
    %50 = vector.extract_strided_slice %47 {offsets = [0, 0], sizes = [8, 32], strides = [1, 1]} : vector<8x96xf32> to vector<8x32xf32>
    %51 = vector.extract_strided_slice %47 {offsets = [0, 32], sizes = [8, 32], strides = [1, 1]} : vector<8x96xf32> to vector<8x32xf32>
    %52 = vector.extract_strided_slice %47 {offsets = [0, 64], sizes = [8, 32], strides = [1, 1]} : vector<8x96xf32> to vector<8x32xf32>
    %53 = arith.mulf %51, %29 : vector<8x32xf32>
    %54 = arith.mulf %50, %49 : vector<8x32xf32>
    %55 = arith.addf %53, %54 : vector<8x32xf32>
    %56 = math.tanh %55 : vector<8x32xf32>
    %57 = arith.mulf %52, %56 : vector<8x32xf32>
    %58 = arith.truncf %57 : vector<8x32xf32> to vector<8x32xbf16>
    %59 = arith.index_cast %36 : i32 to index
    %c0_18 = arith.constant 0 : index
    %60 = vector.load %arg11[%59, %c0_18] : memref<64x32xbf16, #tpu.memory_space<vmem>>, vector<8x32xbf16>
    tpu.vector_store %arg11[%59, %c0_18], %58 {strides = array<i32>} : memref<64x32xbf16, #tpu.memory_space<vmem>>, vector<8x32xbf16>,
    %c2_i32 = arith.constant 2 : i32
    %c8_i32_19 = arith.constant 8 : i32
    %61 = arith.muli %c2_i32, %c8_i32_19 : i32
    %62 = tpu.assume_multiple %61, 8 : i32
    %63 = arith.index_cast %62 : i32 to index
    %c0_20 = arith.constant 0 : index
    %64 = vector.load %arg10[%63, %c0_20] : memref<64x128xf32, #tpu.memory_space<vmem>>, vector<8x128xf32>
    %65 = arith.truncf %57 : vector<8x32xf32> to vector<8x32xbf16>
    %cst_21 = arith.constant dense<0.000000e+00> : vector<8x128xf32>
    %66 = tpu.matmul %65, %8, %cst_21 {dimension_numbers = #tpu.dot_dimension_numbers<[1], [0], [0], [1], [0, 0, 1, 1], [], []>} : vector<8x32xbf16>, vector<32x128xbf16>, vector<8x128xf32> -> vector<8x128xf32>
    %67 = arith.addf %64, %66 : vector<8x128xf32>
    %68 = vector.extract_strided_slice %67 {offsets = [0, 0], sizes = [8, 96], strides = [1, 1]} : vector<8x128xf32> to vector<8x96xf32>
    %69 = arith.negf %68 : vector<8x96xf32>
    %70 = math.exp %69 : vector<8x96xf32>
    %cst_22 = arith.constant 1.000000e+00 : f32
    %71 = vector.broadcast %cst_22 : f32 to vector<8x96xf32>
    %72 = arith.addf %71, %70 : vector<8x96xf32>
    %73 = arith.divf %71, %72 : vector<8x96xf32>
    %74 = vector.extract_strided_slice %67 {offsets = [0, 96], sizes = [8, 32], strides = [1, 1]} : vector<8x128xf32> to vector<8x32xf32>
    %75 = math.tanh %74 : vector<8x32xf32>
    %76 = vector.extract_strided_slice %73 {offsets = [0, 0], sizes = [8, 32], strides = [1, 1]} : vector<8x96xf32> to vector<8x32xf32>
    %77 = vector.extract_strided_slice %73 {offsets = [0, 32], sizes = [8, 32], strides = [1, 1]} : vector<8x96xf32> to vector<8x32xf32>
    %78 = vector.extract_strided_slice %73 {offsets = [0, 64], sizes = [8, 32], strides = [1, 1]} : vector<8x96xf32> to vector<8x32xf32>
    %79 = arith.mulf %77, %55 : vector<8x32xf32>
    %80 = arith.mulf %76, %75 : vector<8x32xf32>
    %81 = arith.addf %79, %80 : vector<8x32xf32>
    %82 = math.tanh %81 : vector<8x32xf32>
    %83 = arith.mulf %78, %82 : vector<8x32xf32>
    %84 = arith.truncf %83 : vector<8x32xf32> to vector<8x32xbf16>
    %85 = arith.index_cast %62 : i32 to index
    %c0_23 = arith.constant 0 : index
    %86 = vector.load %arg11[%85, %c0_23] : memref<64x32xbf16, #tpu.memory_space<vmem>>, vector<8x32xbf16>
    tpu.vector_store %arg11[%85, %c0_23], %84 {strides = array<i32>} : memref<64x32xbf16, #tpu.memory_space<vmem>>, vector<8x32xbf16>,
    %c3_i32 = arith.constant 3 : i32
    %c8_i32_24 = arith.constant 8 : i32
    %87 = arith.muli %c3_i32, %c8_i32_24 : i32
    %88 = tpu.assume_multiple %87, 8 : i32
    %89 = arith.index_cast %88 : i32 to index
    %c0_25 = arith.constant 0 : index
    %90 = vector.load %arg10[%89, %c0_25] : memref<64x128xf32, #tpu.memory_space<vmem>>, vector<8x128xf32>
    %91 = arith.truncf %83 : vector<8x32xf32> to vector<8x32xbf16>
    %cst_26 = arith.constant dense<0.000000e+00> : vector<8x128xf32>
    %92 = tpu.matmul %91, %8, %cst_26 {dimension_numbers = #tpu.dot_dimension_numbers<[1], [0], [0], [1], [0, 0, 1, 1], [], []>} : vector<8x32xbf16>, vector<32x128xbf16>, vector<8x128xf32> -> vector<8x128xf32>
    %93 = arith.addf %90, %92 : vector<8x128xf32>
    %94 = vector.extract_strided_slice %93 {offsets = [0, 0], sizes = [8, 96], strides = [1, 1]} : vector<8x128xf32> to vector<8x96xf32>
    %95 = arith.negf %94 : vector<8x96xf32>
    %96 = math.exp %95 : vector<8x96xf32>
    %cst_27 = arith.constant 1.000000e+00 : f32
    %97 = vector.broadcast %cst_27 : f32 to vector<8x96xf32>
    %98 = arith.addf %97, %96 : vector<8x96xf32>
    %99 = arith.divf %97, %98 : vector<8x96xf32>
    %100 = vector.extract_strided_slice %93 {offsets = [0, 96], sizes = [8, 32], strides = [1, 1]} : vector<8x128xf32> to vector<8x32xf32>
    %101 = math.tanh %100 : vector<8x32xf32>
    %102 = vector.extract_strided_slice %99 {offsets = [0, 0], sizes = [8, 32], strides = [1, 1]} : vector<8x96xf32> to vector<8x32xf32>
    %103 = vector.extract_strided_slice %99 {offsets = [0, 32], sizes = [8, 32], strides = [1, 1]} : vector<8x96xf32> to vector<8x32xf32>
    %104 = vector.extract_strided_slice %99 {offsets = [0, 64], sizes = [8, 32], strides = [1, 1]} : vector<8x96xf32> to vector<8x32xf32>
    %105 = arith.mulf %103, %81 : vector<8x32xf32>
    %106 = arith.mulf %102, %101 : vector<8x32xf32>
    %107 = arith.addf %105, %106 : vector<8x32xf32>
    %108 = math.tanh %107 : vector<8x32xf32>
    %109 = arith.mulf %104, %108 : vector<8x32xf32>
    %110 = arith.truncf %109 : vector<8x32xf32> to vector<8x32xbf16>
    %111 = arith.index_cast %88 : i32 to index
    %c0_28 = arith.constant 0 : index
    %112 = vector.load %arg11[%111, %c0_28] : memref<64x32xbf16, #tpu.memory_space<vmem>>, vector<8x32xbf16>
    tpu.vector_store %arg11[%111, %c0_28], %110 {strides = array<i32>} : memref<64x32xbf16, #tpu.memory_space<vmem>>, vector<8x32xbf16>,
    %c4_i32 = arith.constant 4 : i32
    %c8_i32_29 = arith.constant 8 : i32
    %113 = arith.muli %c4_i32, %c8_i32_29 : i32
    %114 = tpu.assume_multiple %113, 8 : i32
    %115 = arith.index_cast %114 : i32 to index
    %c0_30 = arith.constant 0 : index
    %116 = vector.load %arg10[%115, %c0_30] : memref<64x128xf32, #tpu.memory_space<vmem>>, vector<8x128xf32>
    %117 = arith.truncf %109 : vector<8x32xf32> to vector<8x32xbf16>
    %cst_31 = arith.constant dense<0.000000e+00> : vector<8x128xf32>
    %118 = tpu.matmul %117, %8, %cst_31 {dimension_numbers = #tpu.dot_dimension_numbers<[1], [0], [0], [1], [0, 0, 1, 1], [], []>} : vector<8x32xbf16>, vector<32x128xbf16>, vector<8x128xf32> -> vector<8x128xf32>
    %119 = arith.addf %116, %118 : vector<8x128xf32>
    %120 = vector.extract_strided_slice %119 {offsets = [0, 0], sizes = [8, 96], strides = [1, 1]} : vector<8x128xf32> to vector<8x96xf32>
    %121 = arith.negf %120 : vector<8x96xf32>
    %122 = math.exp %121 : vector<8x96xf32>
    %cst_32 = arith.constant 1.000000e+00 : f32
    %123 = vector.broadcast %cst_32 : f32 to vector<8x96xf32>
    %124 = arith.addf %123, %122 : vector<8x96xf32>
    %125 = arith.divf %123, %124 : vector<8x96xf32>
    %126 = vector.extract_strided_slice %119 {offsets = [0, 96], sizes = [8, 32], strides = [1, 1]} : vector<8x128xf32> to vector<8x32xf32>
    %127 = math.tanh %126 : vector<8x32xf32>
    %128 = vector.extract_strided_slice %125 {offsets = [0, 0], sizes = [8, 32], strides = [1, 1]} : vector<8x96xf32> to vector<8x32xf32>
    %129 = vector.extract_strided_slice %125 {offsets = [0, 32], sizes = [8, 32], strides = [1, 1]} : vector<8x96xf32> to vector<8x32xf32>
    %130 = vector.extract_strided_slice %125 {offsets = [0, 64], sizes = [8, 32], strides = [1, 1]} : vector<8x96xf32> to vector<8x32xf32>
    %131 = arith.mulf %129, %107 : vector<8x32xf32>
    %132 = arith.mulf %128, %127 : vector<8x32xf32>
    %133 = arith.addf %131, %132 : vector<8x32xf32>
    %134 = math.tanh %133 : vector<8x32xf32>
    %135 = arith.mulf %130, %134 : vector<8x32xf32>
    %136 = arith.truncf %135 : vector<8x32xf32> to vector<8x32xbf16>
    %137 = arith.index_cast %114 : i32 to index
    %c0_33 = arith.constant 0 : index
    %138 = vector.load %arg11[%137, %c0_33] : memref<64x32xbf16, #tpu.memory_space<vmem>>, vector<8x32xbf16>
    tpu.vector_store %arg11[%137, %c0_33], %136 {strides = array<i32>} : memref<64x32xbf16, #tpu.memory_space<vmem>>, vector<8x32xbf16>,
    %c5_i32 = arith.constant 5 : i32
    %c8_i32_34 = arith.constant 8 : i32
    %139 = arith.muli %c5_i32, %c8_i32_34 : i32
    %140 = tpu.assume_multiple %139, 8 : i32
    %141 = arith.index_cast %140 : i32 to index
    %c0_35 = arith.constant 0 : index
    %142 = vector.load %arg10[%141, %c0_35] : memref<64x128xf32, #tpu.memory_space<vmem>>, vector<8x128xf32>
    %143 = arith.truncf %135 : vector<8x32xf32> to vector<8x32xbf16>
    %cst_36 = arith.constant dense<0.000000e+00> : vector<8x128xf32>
    %144 = tpu.matmul %143, %8, %cst_36 {dimension_numbers = #tpu.dot_dimension_numbers<[1], [0], [0], [1], [0, 0, 1, 1], [], []>} : vector<8x32xbf16>, vector<32x128xbf16>, vector<8x128xf32> -> vector<8x128xf32>
    %145 = arith.addf %142, %144 : vector<8x128xf32>
    %146 = vector.extract_strided_slice %145 {offsets = [0, 0], sizes = [8, 96], strides = [1, 1]} : vector<8x128xf32> to vector<8x96xf32>
    %147 = arith.negf %146 : vector<8x96xf32>
    %148 = math.exp %147 : vector<8x96xf32>
    %cst_37 = arith.constant 1.000000e+00 : f32
    %149 = vector.broadcast %cst_37 : f32 to vector<8x96xf32>
    %150 = arith.addf %149, %148 : vector<8x96xf32>
    %151 = arith.divf %149, %150 : vector<8x96xf32>
    %152 = vector.extract_strided_slice %145 {offsets = [0, 96], sizes = [8, 32], strides = [1, 1]} : vector<8x128xf32> to vector<8x32xf32>
    %153 = math.tanh %152 : vector<8x32xf32>
    %154 = vector.extract_strided_slice %151 {offsets = [0, 0], sizes = [8, 32], strides = [1, 1]} : vector<8x96xf32> to vector<8x32xf32>
    %155 = vector.extract_strided_slice %151 {offsets = [0, 32], sizes = [8, 32], strides = [1, 1]} : vector<8x96xf32> to vector<8x32xf32>
    %156 = vector.extract_strided_slice %151 {offsets = [0, 64], sizes = [8, 32], strides = [1, 1]} : vector<8x96xf32> to vector<8x32xf32>
    %157 = arith.mulf %155, %133 : vector<8x32xf32>
    %158 = arith.mulf %154, %153 : vector<8x32xf32>
    %159 = arith.addf %157, %158 : vector<8x32xf32>
    %160 = math.tanh %159 : vector<8x32xf32>
    %161 = arith.mulf %156, %160 : vector<8x32xf32>
    %162 = arith.truncf %161 : vector<8x32xf32> to vector<8x32xbf16>
    %163 = arith.index_cast %140 : i32 to index
    %c0_38 = arith.constant 0 : index
    %164 = vector.load %arg11[%163, %c0_38] : memref<64x32xbf16, #tpu.memory_space<vmem>>, vector<8x32xbf16>
    tpu.vector_store %arg11[%163, %c0_38], %162 {strides = array<i32>} : memref<64x32xbf16, #tpu.memory_space<vmem>>, vector<8x32xbf16>,
    %c6_i32 = arith.constant 6 : i32
    %c8_i32_39 = arith.constant 8 : i32
    %165 = arith.muli %c6_i32, %c8_i32_39 : i32
    %166 = tpu.assume_multiple %165, 8 : i32
    %167 = arith.index_cast %166 : i32 to index
    %c0_40 = arith.constant 0 : index
    %168 = vector.load %arg10[%167, %c0_40] : memref<64x128xf32, #tpu.memory_space<vmem>>, vector<8x128xf32>
    %169 = arith.truncf %161 : vector<8x32xf32> to vector<8x32xbf16>
    %cst_41 = arith.constant dense<0.000000e+00> : vector<8x128xf32>
    %170 = tpu.matmul %169, %8, %cst_41 {dimension_numbers = #tpu.dot_dimension_numbers<[1], [0], [0], [1], [0, 0, 1, 1], [], []>} : vector<8x32xbf16>, vector<32x128xbf16>, vector<8x128xf32> -> vector<8x128xf32>
    %171 = arith.addf %168, %170 : vector<8x128xf32>
    %172 = vector.extract_strided_slice %171 {offsets = [0, 0], sizes = [8, 96], strides = [1, 1]} : vector<8x128xf32> to vector<8x96xf32>
    %173 = arith.negf %172 : vector<8x96xf32>
    %174 = math.exp %173 : vector<8x96xf32>
    %cst_42 = arith.constant 1.000000e+00 : f32
    %175 = vector.broadcast %cst_42 : f32 to vector<8x96xf32>
    %176 = arith.addf %175, %174 : vector<8x96xf32>
    %177 = arith.divf %175, %176 : vector<8x96xf32>
    %178 = vector.extract_strided_slice %171 {offsets = [0, 96], sizes = [8, 32], strides = [1, 1]} : vector<8x128xf32> to vector<8x32xf32>
    %179 = math.tanh %178 : vector<8x32xf32>
    %180 = vector.extract_strided_slice %177 {offsets = [0, 0], sizes = [8, 32], strides = [1, 1]} : vector<8x96xf32> to vector<8x32xf32>
    %181 = vector.extract_strided_slice %177 {offsets = [0, 32], sizes = [8, 32], strides = [1, 1]} : vector<8x96xf32> to vector<8x32xf32>
    %182 = vector.extract_strided_slice %177 {offsets = [0, 64], sizes = [8, 32], strides = [1, 1]} : vector<8x96xf32> to vector<8x32xf32>
    %183 = arith.mulf %181, %159 : vector<8x32xf32>
    %184 = arith.mulf %180, %179 : vector<8x32xf32>
    %185 = arith.addf %183, %184 : vector<8x32xf32>
    %186 = math.tanh %185 : vector<8x32xf32>
    %187 = arith.mulf %182, %186 : vector<8x32xf32>
    %188 = arith.truncf %187 : vector<8x32xf32> to vector<8x32xbf16>
    %189 = arith.index_cast %166 : i32 to index
    %c0_43 = arith.constant 0 : index
    %190 = vector.load %arg11[%189, %c0_43] : memref<64x32xbf16, #tpu.memory_space<vmem>>, vector<8x32xbf16>
    tpu.vector_store %arg11[%189, %c0_43], %188 {strides = array<i32>} : memref<64x32xbf16, #tpu.memory_space<vmem>>, vector<8x32xbf16>,
    %c7_i32 = arith.constant 7 : i32
    %c8_i32_44 = arith.constant 8 : i32
    %191 = arith.muli %c7_i32, %c8_i32_44 : i32
    %192 = tpu.assume_multiple %191, 8 : i32
    %193 = arith.index_cast %192 : i32 to index
    %c0_45 = arith.constant 0 : index
    %194 = vector.load %arg10[%193, %c0_45] : memref<64x128xf32, #tpu.memory_space<vmem>>, vector<8x128xf32>
    %195 = arith.truncf %187 : vector<8x32xf32> to vector<8x32xbf16>
    %cst_46 = arith.constant dense<0.000000e+00> : vector<8x128xf32>
    %196 = tpu.matmul %195, %8, %cst_46 {dimension_numbers = #tpu.dot_dimension_numbers<[1], [0], [0], [1], [0, 0, 1, 1], [], []>} : vector<8x32xbf16>, vector<32x128xbf16>, vector<8x128xf32> -> vector<8x128xf32>
    %197 = arith.addf %194, %196 : vector<8x128xf32>
    %198 = vector.extract_strided_slice %197 {offsets = [0, 0], sizes = [8, 96], strides = [1, 1]} : vector<8x128xf32> to vector<8x96xf32>
    %199 = arith.negf %198 : vector<8x96xf32>
    %200 = math.exp %199 : vector<8x96xf32>
    %cst_47 = arith.constant 1.000000e+00 : f32
    %201 = vector.broadcast %cst_47 : f32 to vector<8x96xf32>
    %202 = arith.addf %201, %200 : vector<8x96xf32>
    %203 = arith.divf %201, %202 : vector<8x96xf32>
    %204 = vector.extract_strided_slice %197 {offsets = [0, 96], sizes = [8, 32], strides = [1, 1]} : vector<8x128xf32> to vector<8x32xf32>
    %205 = math.tanh %204 : vector<8x32xf32>
    %206 = vector.extract_strided_slice %203 {offsets = [0, 0], sizes = [8, 32], strides = [1, 1]} : vector<8x96xf32> to vector<8x32xf32>
    %207 = vector.extract_strided_slice %203 {offsets = [0, 32], sizes = [8, 32], strides = [1, 1]} : vector<8x96xf32> to vector<8x32xf32>
    %208 = vector.extract_strided_slice %203 {offsets = [0, 64], sizes = [8, 32], strides = [1, 1]} : vector<8x96xf32> to vector<8x32xf32>
    %209 = arith.mulf %207, %185 : vector<8x32xf32>
    %210 = arith.mulf %206, %205 : vector<8x32xf32>
    %211 = arith.addf %209, %210 : vector<8x32xf32>
    %212 = math.tanh %211 : vector<8x32xf32>
    %213 = arith.mulf %208, %212 : vector<8x32xf32>
    %214 = arith.truncf %213 : vector<8x32xf32> to vector<8x32xbf16>
    %215 = arith.index_cast %192 : i32 to index
    %c0_48 = arith.constant 0 : index
    %216 = vector.load %arg11[%215, %c0_48] : memref<64x32xbf16, #tpu.memory_space<vmem>>, vector<8x32xbf16>
    tpu.vector_store %arg11[%215, %c0_48], %214 {strides = array<i32>} : memref<64x32xbf16, #tpu.memory_space<vmem>>, vector<8x32xbf16>,
    %c8_i32_49 = arith.constant 8 : i32
    %c0_50 = arith.constant 0 : index
    %c0_51 = arith.constant 0 : index
    %217 = vector.load %arg11[%c0_50, %c0_51] : memref<64x32xbf16, #tpu.memory_space<vmem>>, vector<64x32xbf16>
    %c0_52 = arith.constant 0 : index
    %c0_53 = arith.constant 0 : index
    %c0_54 = arith.constant 0 : index
    %218 = vector.load %arg4[%c0_52, %c0_53, %c0_54] : memref<1x32x128xbf16, #tpu.memory_space<vmem>>, vector<1x32x128xbf16>
    %219 = vector.shape_cast %218 : vector<1x32x128xbf16> to vector<32x128xbf16>
    %cst_55 = arith.constant dense<0.000000e+00> : vector<64x128xf32>
    %220 = tpu.matmul %217, %219, %cst_55 {dimension_numbers = #tpu.dot_dimension_numbers<[1], [0], [0], [1], [0, 0, 1, 1], [], []>} : vector<64x32xbf16>, vector<32x128xbf16>, vector<64x128xf32> -> vector<64x128xf32>
    %c0_56 = arith.constant 0 : index
    %c0_57 = arith.constant 0 : index
    %c0_58 = arith.constant 0 : index
    %221 = vector.load %arg6[%c0_56, %c0_57, %c0_58] : memref<1x1x128xf32, #tpu.memory_space<vmem>>, vector<1x1x128xf32>
    %222 = vector.shape_cast %221 : vector<1x1x128xf32> to vector<1x128xf32>
    %223 = vector.broadcast %222 : vector<1x128xf32> to vector<64x128xf32>
    %224 = arith.addf %220, %223 : vector<64x128xf32>
    %c0_59 = arith.constant 0 : index
    %c0_60 = arith.constant 0 : index
    %225 = vector.load %arg10[%c0_59, %c0_60] : memref<64x128xf32, #tpu.memory_space<vmem>>, vector<64x128xf32>
    tpu.vector_store %arg10[%c0_59, %c0_60], %224 {strides = array<i32>} : memref<64x128xf32, #tpu.memory_space<vmem>>, vector<64x128xf32>,
    %c0_61 = arith.constant 0 : index
    %c0_62 = arith.constant 0 : index
    %c0_63 = arith.constant 0 : index
    %226 = vector.load %arg5[%c0_61, %c0_62, %c0_63] : memref<1x32x128xbf16, #tpu.memory_space<vmem>>, vector<1x32x128xbf16>
    %227 = vector.shape_cast %226 : vector<1x32x128xbf16> to vector<32x128xbf16>
    %c0_i32_64 = arith.constant 0 : i32
    %c8_i32_65 = arith.constant 8 : i32
    %228 = arith.muli %c0_i32_64, %c8_i32_65 : i32
    %229 = tpu.assume_multiple %228, 8 : i32
    %230 = arith.index_cast %229 : i32 to index
    %c0_66 = arith.constant 0 : index
    %231 = vector.load %arg10[%230, %c0_66] : memref<64x128xf32, #tpu.memory_space<vmem>>, vector<8x128xf32>
    %232 = arith.truncf %0 : vector<8x32xf32> to vector<8x32xbf16>
    %cst_67 = arith.constant dense<0.000000e+00> : vector<8x128xf32>
    %233 = tpu.matmul %232, %227, %cst_67 {dimension_numbers = #tpu.dot_dimension_numbers<[1], [0], [0], [1], [0, 0, 1, 1], [], []>} : vector<8x32xbf16>, vector<32x128xbf16>, vector<8x128xf32> -> vector<8x128xf32>
    %234 = arith.addf %231, %233 : vector<8x128xf32>
    %235 = vector.extract_strided_slice %234 {offsets = [0, 0], sizes = [8, 96], strides = [1, 1]} : vector<8x128xf32> to vector<8x96xf32>
    %236 = arith.negf %235 : vector<8x96xf32>
    %237 = math.exp %236 : vector<8x96xf32>
    %cst_68 = arith.constant 1.000000e+00 : f32
    %238 = vector.broadcast %cst_68 : f32 to vector<8x96xf32>
    %239 = arith.addf %238, %237 : vector<8x96xf32>
    %240 = arith.divf %238, %239 : vector<8x96xf32>
    %241 = vector.extract_strided_slice %234 {offsets = [0, 96], sizes = [8, 32], strides = [1, 1]} : vector<8x128xf32> to vector<8x32xf32>
    %242 = math.tanh %241 : vector<8x32xf32>
    %243 = vector.extract_strided_slice %240 {offsets = [0, 0], sizes = [8, 32], strides = [1, 1]} : vector<8x96xf32> to vector<8x32xf32>
    %244 = vector.extract_strided_slice %240 {offsets = [0, 32], sizes = [8, 32], strides = [1, 1]} : vector<8x96xf32> to vector<8x32xf32>
    %245 = vector.extract_strided_slice %240 {offsets = [0, 64], sizes = [8, 32], strides = [1, 1]} : vector<8x96xf32> to vector<8x32xf32>
    %246 = arith.mulf %244, %0 : vector<8x32xf32>
    %247 = arith.mulf %243, %242 : vector<8x32xf32>
    %248 = arith.addf %246, %247 : vector<8x32xf32>
    %249 = math.tanh %248 : vector<8x32xf32>
    %250 = arith.mulf %245, %249 : vector<8x32xf32>
    %c1_i32_69 = arith.constant 1 : i32
    %c8_i32_70 = arith.constant 8 : i32
    %251 = arith.muli %c1_i32_69, %c8_i32_70 : i32
    %252 = tpu.assume_multiple %251, 8 : i32
    %253 = arith.index_cast %252 : i32 to index
    %c0_71 = arith.constant 0 : index
    %254 = vector.load %arg10[%253, %c0_71] : memref<64x128xf32, #tpu.memory_space<vmem>>, vector<8x128xf32>
    %255 = arith.truncf %250 : vector<8x32xf32> to vector<8x32xbf16>
    %cst_72 = arith.constant dense<0.000000e+00> : vector<8x128xf32>
    %256 = tpu.matmul %255, %227, %cst_72 {dimension_numbers = #tpu.dot_dimension_numbers<[1], [0], [0], [1], [0, 0, 1, 1], [], []>} : vector<8x32xbf16>, vector<32x128xbf16>, vector<8x128xf32> -> vector<8x128xf32>
    %257 = arith.addf %254, %256 : vector<8x128xf32>
    %258 = vector.extract_strided_slice %257 {offsets = [0, 0], sizes = [8, 96], strides = [1, 1]} : vector<8x128xf32> to vector<8x96xf32>
    %259 = arith.negf %258 : vector<8x96xf32>
    %260 = math.exp %259 : vector<8x96xf32>
    %cst_73 = arith.constant 1.000000e+00 : f32
    %261 = vector.broadcast %cst_73 : f32 to vector<8x96xf32>
    %262 = arith.addf %261, %260 : vector<8x96xf32>
    %263 = arith.divf %261, %262 : vector<8x96xf32>
    %264 = vector.extract_strided_slice %257 {offsets = [0, 96], sizes = [8, 32], strides = [1, 1]} : vector<8x128xf32> to vector<8x32xf32>
    %265 = math.tanh %264 : vector<8x32xf32>
    %266 = vector.extract_strided_slice %263 {offsets = [0, 0], sizes = [8, 32], strides = [1, 1]} : vector<8x96xf32> to vector<8x32xf32>
    %267 = vector.extract_strided_slice %263 {offsets = [0, 32], sizes = [8, 32], strides = [1, 1]} : vector<8x96xf32> to vector<8x32xf32>
    %268 = vector.extract_strided_slice %263 {offsets = [0, 64], sizes = [8, 32], strides = [1, 1]} : vector<8x96xf32> to vector<8x32xf32>
    %269 = arith.mulf %267, %248 : vector<8x32xf32>
    %270 = arith.mulf %266, %265 : vector<8x32xf32>
    %271 = arith.addf %269, %270 : vector<8x32xf32>
    %272 = math.tanh %271 : vector<8x32xf32>
    %273 = arith.mulf %268, %272 : vector<8x32xf32>
    %c2_i32_74 = arith.constant 2 : i32
    %c8_i32_75 = arith.constant 8 : i32
    %274 = arith.muli %c2_i32_74, %c8_i32_75 : i32
    %275 = tpu.assume_multiple %274, 8 : i32
    %276 = arith.index_cast %275 : i32 to index
    %c0_76 = arith.constant 0 : index
    %277 = vector.load %arg10[%276, %c0_76] : memref<64x128xf32, #tpu.memory_space<vmem>>, vector<8x128xf32>
    %278 = arith.truncf %273 : vector<8x32xf32> to vector<8x32xbf16>
    %cst_77 = arith.constant dense<0.000000e+00> : vector<8x128xf32>
    %279 = tpu.matmul %278, %227, %cst_77 {dimension_numbers = #tpu.dot_dimension_numbers<[1], [0], [0], [1], [0, 0, 1, 1], [], []>} : vector<8x32xbf16>, vector<32x128xbf16>, vector<8x128xf32> -> vector<8x128xf32>
    %280 = arith.addf %277, %279 : vector<8x128xf32>
    %281 = vector.extract_strided_slice %280 {offsets = [0, 0], sizes = [8, 96], strides = [1, 1]} : vector<8x128xf32> to vector<8x96xf32>
    %282 = arith.negf %281 : vector<8x96xf32>
    %283 = math.exp %282 : vector<8x96xf32>
    %cst_78 = arith.constant 1.000000e+00 : f32
    %284 = vector.broadcast %cst_78 : f32 to vector<8x96xf32>
    %285 = arith.addf %284, %283 : vector<8x96xf32>
    %286 = arith.divf %284, %285 : vector<8x96xf32>
    %287 = vector.extract_strided_slice %280 {offsets = [0, 96], sizes = [8, 32], strides = [1, 1]} : vector<8x128xf32> to vector<8x32xf32>
    %288 = math.tanh %287 : vector<8x32xf32>
    %289 = vector.extract_strided_slice %286 {offsets = [0, 0], sizes = [8, 32], strides = [1, 1]} : vector<8x96xf32> to vector<8x32xf32>
    %290 = vector.extract_strided_slice %286 {offsets = [0, 32], sizes = [8, 32], strides = [1, 1]} : vector<8x96xf32> to vector<8x32xf32>
    %291 = vector.extract_strided_slice %286 {offsets = [0, 64], sizes = [8, 32], strides = [1, 1]} : vector<8x96xf32> to vector<8x32xf32>
    %292 = arith.mulf %290, %271 : vector<8x32xf32>
    %293 = arith.mulf %289, %288 : vector<8x32xf32>
    %294 = arith.addf %292, %293 : vector<8x32xf32>
    %295 = math.tanh %294 : vector<8x32xf32>
    %296 = arith.mulf %291, %295 : vector<8x32xf32>
    %c3_i32_79 = arith.constant 3 : i32
    %c8_i32_80 = arith.constant 8 : i32
    %297 = arith.muli %c3_i32_79, %c8_i32_80 : i32
    %298 = tpu.assume_multiple %297, 8 : i32
    %299 = arith.index_cast %298 : i32 to index
    %c0_81 = arith.constant 0 : index
    %300 = vector.load %arg10[%299, %c0_81] : memref<64x128xf32, #tpu.memory_space<vmem>>, vector<8x128xf32>
    %301 = arith.truncf %296 : vector<8x32xf32> to vector<8x32xbf16>
    %cst_82 = arith.constant dense<0.000000e+00> : vector<8x128xf32>
    %302 = tpu.matmul %301, %227, %cst_82 {dimension_numbers = #tpu.dot_dimension_numbers<[1], [0], [0], [1], [0, 0, 1, 1], [], []>} : vector<8x32xbf16>, vector<32x128xbf16>, vector<8x128xf32> -> vector<8x128xf32>
    %303 = arith.addf %300, %302 : vector<8x128xf32>
    %304 = vector.extract_strided_slice %303 {offsets = [0, 0], sizes = [8, 96], strides = [1, 1]} : vector<8x128xf32> to vector<8x96xf32>
    %305 = arith.negf %304 : vector<8x96xf32>
    %306 = math.exp %305 : vector<8x96xf32>
    %cst_83 = arith.constant 1.000000e+00 : f32
    %307 = vector.broadcast %cst_83 : f32 to vector<8x96xf32>
    %308 = arith.addf %307, %306 : vector<8x96xf32>
    %309 = arith.divf %307, %308 : vector<8x96xf32>
    %310 = vector.extract_strided_slice %303 {offsets = [0, 96], sizes = [8, 32], strides = [1, 1]} : vector<8x128xf32> to vector<8x32xf32>
    %311 = math.tanh %310 : vector<8x32xf32>
    %312 = vector.extract_strided_slice %309 {offsets = [0, 0], sizes = [8, 32], strides = [1, 1]} : vector<8x96xf32> to vector<8x32xf32>
    %313 = vector.extract_strided_slice %309 {offsets = [0, 32], sizes = [8, 32], strides = [1, 1]} : vector<8x96xf32> to vector<8x32xf32>
    %314 = vector.extract_strided_slice %309 {offsets = [0, 64], sizes = [8, 32], strides = [1, 1]} : vector<8x96xf32> to vector<8x32xf32>
    %315 = arith.mulf %313, %294 : vector<8x32xf32>
    %316 = arith.mulf %312, %311 : vector<8x32xf32>
    %317 = arith.addf %315, %316 : vector<8x32xf32>
    %318 = math.tanh %317 : vector<8x32xf32>
    %319 = arith.mulf %314, %318 : vector<8x32xf32>
    %c4_i32_84 = arith.constant 4 : i32
    %c8_i32_85 = arith.constant 8 : i32
    %320 = arith.muli %c4_i32_84, %c8_i32_85 : i32
    %321 = tpu.assume_multiple %320, 8 : i32
    %322 = arith.index_cast %321 : i32 to index
    %c0_86 = arith.constant 0 : index
    %323 = vector.load %arg10[%322, %c0_86] : memref<64x128xf32, #tpu.memory_space<vmem>>, vector<8x128xf32>
    %324 = arith.truncf %319 : vector<8x32xf32> to vector<8x32xbf16>
    %cst_87 = arith.constant dense<0.000000e+00> : vector<8x128xf32>
    %325 = tpu.matmul %324, %227, %cst_87 {dimension_numbers = #tpu.dot_dimension_numbers<[1], [0], [0], [1], [0, 0, 1, 1], [], []>} : vector<8x32xbf16>, vector<32x128xbf16>, vector<8x128xf32> -> vector<8x128xf32>
    %326 = arith.addf %323, %325 : vector<8x128xf32>
    %327 = vector.extract_strided_slice %326 {offsets = [0, 0], sizes = [8, 96], strides = [1, 1]} : vector<8x128xf32> to vector<8x96xf32>
    %328 = arith.negf %327 : vector<8x96xf32>
    %329 = math.exp %328 : vector<8x96xf32>
    %cst_88 = arith.constant 1.000000e+00 : f32
    %330 = vector.broadcast %cst_88 : f32 to vector<8x96xf32>
    %331 = arith.addf %330, %329 : vector<8x96xf32>
    %332 = arith.divf %330, %331 : vector<8x96xf32>
    %333 = vector.extract_strided_slice %326 {offsets = [0, 96], sizes = [8, 32], strides = [1, 1]} : vector<8x128xf32> to vector<8x32xf32>
    %334 = math.tanh %333 : vector<8x32xf32>
    %335 = vector.extract_strided_slice %332 {offsets = [0, 0], sizes = [8, 32], strides = [1, 1]} : vector<8x96xf32> to vector<8x32xf32>
    %336 = vector.extract_strided_slice %332 {offsets = [0, 32], sizes = [8, 32], strides = [1, 1]} : vector<8x96xf32> to vector<8x32xf32>
    %337 = vector.extract_strided_slice %332 {offsets = [0, 64], sizes = [8, 32], strides = [1, 1]} : vector<8x96xf32> to vector<8x32xf32>
    %338 = arith.mulf %336, %317 : vector<8x32xf32>
    %339 = arith.mulf %335, %334 : vector<8x32xf32>
    %340 = arith.addf %338, %339 : vector<8x32xf32>
    %341 = math.tanh %340 : vector<8x32xf32>
    %342 = arith.mulf %337, %341 : vector<8x32xf32>
    %c5_i32_89 = arith.constant 5 : i32
    %c8_i32_90 = arith.constant 8 : i32
    %343 = arith.muli %c5_i32_89, %c8_i32_90 : i32
    %344 = tpu.assume_multiple %343, 8 : i32
    %345 = arith.index_cast %344 : i32 to index
    %c0_91 = arith.constant 0 : index
    %346 = vector.load %arg10[%345, %c0_91] : memref<64x128xf32, #tpu.memory_space<vmem>>, vector<8x128xf32>
    %347 = arith.truncf %342 : vector<8x32xf32> to vector<8x32xbf16>
    %cst_92 = arith.constant dense<0.000000e+00> : vector<8x128xf32>
    %348 = tpu.matmul %347, %227, %cst_92 {dimension_numbers = #tpu.dot_dimension_numbers<[1], [0], [0], [1], [0, 0, 1, 1], [], []>} : vector<8x32xbf16>, vector<32x128xbf16>, vector<8x128xf32> -> vector<8x128xf32>
    %349 = arith.addf %346, %348 : vector<8x128xf32>
    %350 = vector.extract_strided_slice %349 {offsets = [0, 0], sizes = [8, 96], strides = [1, 1]} : vector<8x128xf32> to vector<8x96xf32>
    %351 = arith.negf %350 : vector<8x96xf32>
    %352 = math.exp %351 : vector<8x96xf32>
    %cst_93 = arith.constant 1.000000e+00 : f32
    %353 = vector.broadcast %cst_93 : f32 to vector<8x96xf32>
    %354 = arith.addf %353, %352 : vector<8x96xf32>
    %355 = arith.divf %353, %354 : vector<8x96xf32>
    %356 = vector.extract_strided_slice %349 {offsets = [0, 96], sizes = [8, 32], strides = [1, 1]} : vector<8x128xf32> to vector<8x32xf32>
    %357 = math.tanh %356 : vector<8x32xf32>
    %358 = vector.extract_strided_slice %355 {offsets = [0, 0], sizes = [8, 32], strides = [1, 1]} : vector<8x96xf32> to vector<8x32xf32>
    %359 = vector.extract_strided_slice %355 {offsets = [0, 32], sizes = [8, 32], strides = [1, 1]} : vector<8x96xf32> to vector<8x32xf32>
    %360 = vector.extract_strided_slice %355 {offsets = [0, 64], sizes = [8, 32], strides = [1, 1]} : vector<8x96xf32> to vector<8x32xf32>
    %361 = arith.mulf %359, %340 : vector<8x32xf32>
    %362 = arith.mulf %358, %357 : vector<8x32xf32>
    %363 = arith.addf %361, %362 : vector<8x32xf32>
    %364 = math.tanh %363 : vector<8x32xf32>
    %365 = arith.mulf %360, %364 : vector<8x32xf32>
    %c6_i32_94 = arith.constant 6 : i32
    %c8_i32_95 = arith.constant 8 : i32
    %366 = arith.muli %c6_i32_94, %c8_i32_95 : i32
    %367 = tpu.assume_multiple %366, 8 : i32
    %368 = arith.index_cast %367 : i32 to index
    %c0_96 = arith.constant 0 : index
    %369 = vector.load %arg10[%368, %c0_96] : memref<64x128xf32, #tpu.memory_space<vmem>>, vector<8x128xf32>
    %370 = arith.truncf %365 : vector<8x32xf32> to vector<8x32xbf16>
    %cst_97 = arith.constant dense<0.000000e+00> : vector<8x128xf32>
    %371 = tpu.matmul %370, %227, %cst_97 {dimension_numbers = #tpu.dot_dimension_numbers<[1], [0], [0], [1], [0, 0, 1, 1], [], []>} : vector<8x32xbf16>, vector<32x128xbf16>, vector<8x128xf32> -> vector<8x128xf32>
    %372 = arith.addf %369, %371 : vector<8x128xf32>
    %373 = vector.extract_strided_slice %372 {offsets = [0, 0], sizes = [8, 96], strides = [1, 1]} : vector<8x128xf32> to vector<8x96xf32>
    %374 = arith.negf %373 : vector<8x96xf32>
    %375 = math.exp %374 : vector<8x96xf32>
    %cst_98 = arith.constant 1.000000e+00 : f32
    %376 = vector.broadcast %cst_98 : f32 to vector<8x96xf32>
    %377 = arith.addf %376, %375 : vector<8x96xf32>
    %378 = arith.divf %376, %377 : vector<8x96xf32>
    %379 = vector.extract_strided_slice %372 {offsets = [0, 96], sizes = [8, 32], strides = [1, 1]} : vector<8x128xf32> to vector<8x32xf32>
    %380 = math.tanh %379 : vector<8x32xf32>
    %381 = vector.extract_strided_slice %378 {offsets = [0, 0], sizes = [8, 32], strides = [1, 1]} : vector<8x96xf32> to vector<8x32xf32>
    %382 = vector.extract_strided_slice %378 {offsets = [0, 32], sizes = [8, 32], strides = [1, 1]} : vector<8x96xf32> to vector<8x32xf32>
    %383 = vector.extract_strided_slice %378 {offsets = [0, 64], sizes = [8, 32], strides = [1, 1]} : vector<8x96xf32> to vector<8x32xf32>
    %384 = arith.mulf %382, %363 : vector<8x32xf32>
    %385 = arith.mulf %381, %380 : vector<8x32xf32>
    %386 = arith.addf %384, %385 : vector<8x32xf32>
    %387 = math.tanh %386 : vector<8x32xf32>
    %388 = arith.mulf %383, %387 : vector<8x32xf32>
    %c7_i32_99 = arith.constant 7 : i32
    %c8_i32_100 = arith.constant 8 : i32
    %389 = arith.muli %c7_i32_99, %c8_i32_100 : i32
    %390 = tpu.assume_multiple %389, 8 : i32
    %391 = arith.index_cast %390 : i32 to index
    %c0_101 = arith.constant 0 : index
    %392 = vector.load %arg10[%391, %c0_101] : memref<64x128xf32, #tpu.memory_space<vmem>>, vector<8x128xf32>
    %393 = arith.truncf %388 : vector<8x32xf32> to vector<8x32xbf16>
    %cst_102 = arith.constant dense<0.000000e+00> : vector<8x128xf32>
    %394 = tpu.matmul %393, %227, %cst_102 {dimension_numbers = #tpu.dot_dimension_numbers<[1], [0], [0], [1], [0, 0, 1, 1], [], []>} : vector<8x32xbf16>, vector<32x128xbf16>, vector<8x128xf32> -> vector<8x128xf32>
    %395 = arith.addf %392, %394 : vector<8x128xf32>
    %396 = vector.extract_strided_slice %395 {offsets = [0, 0], sizes = [8, 96], strides = [1, 1]} : vector<8x128xf32> to vector<8x96xf32>
    %397 = arith.negf %396 : vector<8x96xf32>
    %398 = math.exp %397 : vector<8x96xf32>
    %cst_103 = arith.constant 1.000000e+00 : f32
    %399 = vector.broadcast %cst_103 : f32 to vector<8x96xf32>
    %400 = arith.addf %399, %398 : vector<8x96xf32>
    %401 = arith.divf %399, %400 : vector<8x96xf32>
    %402 = vector.extract_strided_slice %395 {offsets = [0, 96], sizes = [8, 32], strides = [1, 1]} : vector<8x128xf32> to vector<8x32xf32>
    %403 = math.tanh %402 : vector<8x32xf32>
    %404 = vector.extract_strided_slice %401 {offsets = [0, 0], sizes = [8, 32], strides = [1, 1]} : vector<8x96xf32> to vector<8x32xf32>
    %405 = vector.extract_strided_slice %401 {offsets = [0, 32], sizes = [8, 32], strides = [1, 1]} : vector<8x96xf32> to vector<8x32xf32>
    %406 = vector.extract_strided_slice %401 {offsets = [0, 64], sizes = [8, 32], strides = [1, 1]} : vector<8x96xf32> to vector<8x32xf32>
    %407 = arith.mulf %405, %386 : vector<8x32xf32>
    %408 = arith.mulf %404, %403 : vector<8x32xf32>
    %409 = arith.addf %407, %408 : vector<8x32xf32>
    %410 = math.tanh %409 : vector<8x32xf32>
    %411 = arith.mulf %406, %410 : vector<8x32xf32>
    %c8_i32_104 = arith.constant 8 : i32
    %c0_105 = arith.constant 0 : index
    %c0_106 = arith.constant 0 : index
    %412 = vector.load %arg7[%c0_105, %c0_106] : memref<1x32xf32, #tpu.memory_space<vmem>>, vector<1x32xf32>
    %413 = vector.broadcast %412 : vector<1x32xf32> to vector<8x32xf32>
    %414 = arith.mulf %411, %413 : vector<8x32xf32>
    %cst_107 = arith.constant dense<0.000000e+00> : vector<8xf32>
    %415 = vector.multi_reduction <add>, %414, %cst_107 [1] : vector<8x32xf32> to vector<8xf32>
    %416 = vector.shape_cast %415 : vector<8xf32> to vector<8x1xf32>
    %c0_108 = arith.constant 0 : index
    %c0_109 = arith.constant 0 : index
    %417 = vector.load %arg8[%c0_108, %c0_109] : memref<1x1xf32, #tpu.memory_space<vmem>>, vector<1x1xf32>
    %418 = vector.broadcast %417 : vector<1x1xf32> to vector<8x1xf32>
    %419 = arith.addf %416, %418 : vector<8x1xf32>
    %c0_110 = arith.constant 0 : index
    %c0_111 = arith.constant 0 : index
    %420 = vector.load %arg9[%c0_110, %c0_111] : memref<8x1xf32, #tpu.memory_space<vmem>>, vector<8x1xf32>
    tpu.vector_store %arg9[%c0_110, %c0_111], %419 {strides = array<i32>} : memref<8x1xf32, #tpu.memory_space<vmem>>, vector<8x1xf32>,
    return
  }
}

</mosaic_0001>

<llo_original>
// kernel: tpu_custom_call.1
$region0: #{tpu_custom_call.1}
  #allocation0 [shape = 'u32[]', space=smem, size = 0x4, offset = 0x4, fixed_abs, tag = 'smem constant byte address 0x4 - core index']
  #allocation1 [shape = 'u32[144,128]{1,0:T(1,128)}', space=vmem, size = 0x12000, scoped, tag = 'internal scratch']
  #allocation2 [shape = 'f32[64,128]{1,0:T(8,128)}', space=vmem, size = 0x8000, scoped, tag = 'scratch operand']
  #allocation3 [shape = 'bf16[64,32]{1,0:T(8,128)(2,1)}', space=vmem, size = 0x4000, scoped, tag = 'scratch operand']
  #allocation4 [shape = 'f32[1,1]{1,0:T(1,128)S(1)}', space=vmem, size = 0x200, scoped, tag = 'scoped memory for tpu_custom_call.1']
  %s0 = inlined_call_operand.vmem [shape: bf16[64,16], index: 0, kind: input, shape index: {}]
  %s1 = inlined_call_operand.hbm [shape: bf16[16,128], index: 1, kind: input, shape index: {}]
  %s2 = inlined_call_operand.vmem [shape: bf16[32,128], index: 2, kind: input, shape index: {}]
  %s3 = inlined_call_operand.vmem [shape: f32[1,128], index: 3, kind: input, shape index: {}]
  %s4 = inlined_call_operand.vmem [shape: bf16[1,32,128], index: 4, kind: input, shape index: {}]
  %s5 = inlined_call_operand.vmem [shape: bf16[1,32,128], index: 5, kind: input, shape index: {}]
  %s6 = inlined_call_operand.vmem [shape: f32[1,1,128], index: 6, kind: input, shape index: {}]
  %s7 = inlined_call_operand.vmem [shape: f32[1,32], index: 7, kind: input, shape index: {}]
  %s8 = inlined_call_operand.<no memory space> [shape: f32[1,1], index: 8, kind: input, shape index: {}]
  %s9 = inlined_call_operand.vmem [shape: f32[8,1], index: 9, kind: output, shape index: {}]
  %s10 = sld [smem:[#allocation0]]
  $region50: #{tpu_custom_call.1} parent=0
    _
  %s12 = ssub.s32 1, %s10
  %s13 = scalar_select 0, %s12, %s10
  %v14 = vstv %s8
  %15 = vst [vmem:[#allocation4] sm:$0x1] %v14
  $region1: #{tpu_custom_call.1} parent=0
    #allocation5 [shape = 'u8[4096]{0}', space=vmem, size = 0x1000, scoped, tag = 'input window, operand 1, single buffered']
    #allocation6 [shape = 's32[1]{0}', space=sflag, size = 0x4, scoped, tag = 'scoped memory for tpu_custom_call.1']
    %16 = vsyncpa [#allocation6], 0
    // Predicated region
    $region2: #{tpu_custom_call.1} parent=1 // pred_check
      _
    $region3: #{tpu_custom_call.1} parent=1 // pred_check_branch
      %18 = sbr.rel (0) target = $region5
    $region4: #{tpu_custom_call.1} parent=1 // pred_region
      _
    $region5: #{tpu_custom_call.1} parent=1 // pred_fallthru
      _
    // Predicated region
    $region6: #{tpu_custom_call.1} parent=1 // pred_check
      _
    $region7: #{tpu_custom_call.1} parent=1 // pred_check_branch
      %20 = sbr.rel (0) target = $region9
    $region8: #{tpu_custom_call.1} parent=1 // pred_region
      %s22 = ssub.s32 128, 128
      %23 = vsyncadd [#allocation6], %s22
      %s24 = sshll.u32 [#allocation5], 4
      %s25 = int_to_ptr.vmem [resolvable:$true] %s24
      %30 = dma.hbm_to_vmem [thread:$0]  %s1, 128, %s25, [#allocation6], 64, 64, 4
    $region9: #{tpu_custom_call.1} parent=1 // pred_fallthru
      _
    // Predicated region
    $region10: #{tpu_custom_call.1} parent=1 // pred_check
      _
    $region11: #{tpu_custom_call.1} parent=1 // pred_check_branch
      %32 = sbr.rel (0) target = $region13
    $region12: #{tpu_custom_call.1} parent=1 // pred_region
      _
    $region13: #{tpu_custom_call.1} parent=1 // pred_fallthru
      _
    // Predicated region
    $region14: #{tpu_custom_call.1} parent=1 // pred_check
      _
    $region15: #{tpu_custom_call.1} parent=1 // pred_check_branch
      %34 = sbr.rel (0) target = $region17
    $region16: #{tpu_custom_call.1} parent=1 // pred_region
      _
    $region17: #{tpu_custom_call.1} parent=1 // pred_fallthru
      _
    // Predicated region
    $region18: #{tpu_custom_call.1} parent=1 // pred_check
      _
    $region19: #{tpu_custom_call.1} parent=1 // pred_check_branch
      %36 = sbr.rel (0) target = $region21
    $region20: #{tpu_custom_call.1} parent=1 // pred_region
      _
    $region21: #{tpu_custom_call.1} parent=1 // pred_fallthru
      _
    // Predicated region
    $region22: #{tpu_custom_call.1} parent=1 // pred_check
      _
    $region23: #{tpu_custom_call.1} parent=1 // pred_check_branch
      %38 = sbr.rel (0) target = $region25
    $region24: #{tpu_custom_call.1} parent=1 // pred_region
      _
    $region25: #{tpu_custom_call.1} parent=1 // pred_fallthru
      _
    // Predicated region
    $region26: #{tpu_custom_call.1} parent=1 // pred_check
      _
    $region27: #{tpu_custom_call.1} parent=1 // pred_check_branch
      %40 = sbr.rel (0) target = $region29
    $region28: #{tpu_custom_call.1} parent=1 // pred_region
      _
    $region29: #{tpu_custom_call.1} parent=1 // pred_fallthru
      _
    // Predicated region
    $region30: #{tpu_custom_call.1} parent=1 // pred_check
      _
    $region31: #{tpu_custom_call.1} parent=1 // pred_check_branch
      %42 = sbr.rel (0) target = $region33
    $region32: #{tpu_custom_call.1} parent=1 // pred_region
      _
    $region33: #{tpu_custom_call.1} parent=1 // pred_fallthru
      _
    // Predicated region
    $region34: #{tpu_custom_call.1} parent=1 // pred_check
      _
    $region35: #{tpu_custom_call.1} parent=1 // pred_check_branch
      %44 = sbr.rel (0) target = $region37
    $region36: #{tpu_custom_call.1} parent=1 // pred_region
      _
    $region37: #{tpu_custom_call.1} parent=1 // pred_fallthru
      _
    // Predicated region
    $region38: #{tpu_custom_call.1} parent=1 // pred_check
      _
    $region39: #{tpu_custom_call.1} parent=1 // pred_check_branch
      %46 = sbr.rel (0) target = $region41
    $region40: #{tpu_custom_call.1} parent=1 // pred_region
      %47 = dma.done [#allocation6], 128
    $region41: #{tpu_custom_call.1} parent=1 // pred_fallthru
      _
    %v49 = vld [vmem:[%s0] sm:$0xf]
    %v50 = vld [vmem:[%s0 + $0x4] sm:$0xf]
    %v51 = vld [vmem:[%s0 + $0x8] sm:$0xf]
    %v52 = vld [vmem:[%s0 + $0xc] sm:$0xf]
    %v53 = vld [vmem:[%s0 + $0x10] sm:$0xf]
    %v54 = vld [vmem:[%s0 + $0x14] sm:$0xf]
    %v55 = vld [vmem:[%s0 + $0x18] sm:$0xf]
    %v56 = vld [vmem:[%s0 + $0x1c] sm:$0xf]
    %v57 = vld [vmem:[#allocation5] sm:$0xf]
    %v58 = vld [vmem:[#allocation5 + $0x4] sm:$0xf]
    %v59 = vld [vmem:[%s3] sm:$0x1]
    %v61 = vlaneseq
    %v62 = vshrl.u32 %v61, 7
    %v63 = vsub.s32 0, %v62
    %v64 = vrot.slane %v59, %v63
    %v74 = vunpack.c.l.b16 %v49
    %v75 = vunpack.c.l.b16 %v50
    %v76 = vunpack.c.l.b16 %v51
    %v77 = vunpack.c.l.b16 %v52
    %v78 = vunpack.c.l.b16 %v53
    %v79 = vunpack.c.l.b16 %v54
    %v80 = vunpack.c.l.b16 %v55
    %v81 = vunpack.c.l.b16 %v56
    %v82 = vpack.c.b16 %v75, %v74
    %v83 = vpack.c.b16 %v77, %v76
    %v84 = vpack.c.b16 %v79, %v78
    %v85 = vpack.c.b16 %v81, %v80
    %v88 = vunpack.c.l.b16 %v57
    %v89 = vunpack.c.l.b16 %v58
    %v90 = vpack.c.b16 %v89, %v88
    %vm92 = vcmask 130048
    %v94 = vsel %vm92, %v82, 0
    %v97 = vsel %vm92, %v83, 0
    %v100 = vsel %vm92, %v84, 0
    %v103 = vsel %vm92, %v85, 0
    %105 = vmatprep.subr.bf16.mxu0 0
    %106 = vmatpush1.bf16.msra.mxu0 0
    %107 = vmatprep.subr.bf16.mxu0 0
    %108 = vmatpush1.bf16.msra.mxu0 0
    %109 = vmatprep.subr.bf16.mxu0 0
    %110 = vmatpush1.bf16.msra.mxu0 0
    %111 = vmatprep.subr.bf16.mxu0 0
    %112 = vmatpush1.bf16.msra.mxu0 0
    %113 = vmatprep.subr.bf16.mxu0 0
    %114 = vmatpush1.bf16.msra.mxu0 0
    %115 = vmatprep.subr.bf16.mxu0 0
    %116 = vmatpush1.bf16.msra.mxu0 0
    %117 = vmatprep.subr.bf16.mxu0 0
    %118 = vmatpush1.bf16.msra.mxu0 0
    %119 = vmatprep.subr.bf16.mxu0 0
    %120 = vmatpush1.bf16.msra.mxu0 %v90
    %121 = vmatprep.subr.bf16.mxu0 0
    %122 = vmatpush2.bf16.msra.mxu0 0
    %123 = vmatprep.subr.bf16.mxu0 0
    %124 = vmatpush2.bf16.msra.mxu0 0
    %125 = vmatprep.subr.bf16.mxu0 0
    %126 = vmatpush2.bf16.msra.mxu0 0
    %127 = vmatprep.subr.bf16.mxu0 0
    %128 = vmatpush2.bf16.msra.mxu0 0
    %129 = vmatprep.subr.bf16.mxu0 0
    %130 = vmatpush2.bf16.msra.mxu0 0
    %131 = vmatprep.subr.bf16.mxu0 0
    %132 = vmatpush2.bf16.msra.mxu0 0
    %133 = vmatprep.subr.bf16.mxu0 0
    %134 = vmatpush2.bf16.msra.mxu0 0
    %135 = vmatprep.subr.bf16.mxu0 0
    %136 = vmatpush2.bf16.msra.mxu0 0
    %137 = vmatprep.mubr.bf16.mxu0 0
    %138 = vmatmul.mubr.bf16.gmra.mxu0 %v94
    %v139 = vpop.f32.mrf.mxu0
    %v140 = vadd.f32 %v64, %v139
    %v141 = vpop.f32.mrf.mxu0
    %v142 = vpop.f32.mrf.mxu0
    %v143 = vadd.f32 %v64, %v142
    %v144 = vpop.f32.mrf.mxu0
    %145 = vmatprep.mubr.bf16.mxu0 0
    %146 = vmatmul.mubr.bf16.gmra.mxu0 %v97
    %v147 = vpop.f32.mrf.mxu0
    %v148 = vadd.f32 %v64, %v147
    %v149 = vpop.f32.mrf.mxu0
    %v150 = vpop.f32.mrf.mxu0
    %v151 = vadd.f32 %v64, %v150
    %v152 = vpop.f32.mrf.mxu0
    %153 = vmatprep.mubr.bf16.mxu0 0
    %154 = vmatmul.mubr.bf16.gmra.mxu0 %v100
    %v155 = vpop.f32.mrf.mxu0
    %v156 = vadd.f32 %v64, %v155
    %v157 = vpop.f32.mrf.mxu0
    %v158 = vpop.f32.mrf.mxu0
    %v159 = vadd.f32 %v64, %v158
    %v160 = vpop.f32.mrf.mxu0
    %161 = vmatprep.mubr.bf16.mxu0 0
    %162 = vmatmul.mubr.bf16.gmra.mxu0 %v103
    %v163 = vpop.f32.mrf.mxu0
    %v164 = vadd.f32 %v64, %v163
    %v165 = vpop.f32.mrf.mxu0
    %v166 = vpop.f32.mrf.mxu0
    %v167 = vadd.f32 %v64, %v166
    %v168 = vpop.f32.mrf.mxu0
    %169 = vdwg.mxu0
    %170 = vst [vmem:[#allocation2] sm:$0xff] %v140
    %171 = vst [vmem:[#allocation2 + $0x8] sm:$0xff] %v143
    %172 = vst [vmem:[#allocation2 + $0x10] sm:$0xff] %v148
    %173 = vst [vmem:[#allocation2 + $0x18] sm:$0xff] %v151
    %174 = vst [vmem:[#allocation2 + $0x20] sm:$0xff] %v156
    %175 = vst [vmem:[#allocation2 + $0x28] sm:$0xff] %v159
    %176 = vst [vmem:[#allocation2 + $0x30] sm:$0xff] %v164
    %177 = vst [vmem:[#allocation2 + $0x38] sm:$0xff] %v167
    %v178 = vld [vmem:[%s2] sm:$0xf]
    %v179 = vld [vmem:[%s2 + $0x4] sm:$0xf]
    %v180 = vld [vmem:[%s2 + $0x8] sm:$0xf]
    %v181 = vld [vmem:[%s2 + $0xc] sm:$0xf]
    %v182 = vld [vmem:[#allocation2] sm:$0xff]
    %v187 = vunpack.c.l.b16 %v178
    %v188 = vunpack.c.l.b16 %v179
    %v189 = vunpack.c.l.b16 %v180
    %v190 = vunpack.c.l.b16 %v181
    %v191 = vpack.c.b16 %v188, %v187
    %v192 = vpack.c.b16 %v190, %v189
    %vm195 = vcmask 261120
    %v197 = vsel %vm195, 0, 0
    %199 = vmatprep.subr.bf16.mxu0 0
    %200 = vmatpush1.bf16.msra.mxu0 0
    %201 = vmatprep.subr.bf16.mxu0 0
    %202 = vmatpush1.bf16.msra.mxu0 0
    %203 = vmatprep.subr.bf16.mxu0 0
    %204 = vmatpush1.bf16.msra.mxu0 0
    %205 = vmatprep.subr.bf16.mxu0 0
    %206 = vmatpush1.bf16.msra.mxu0 0
    %207 = vmatprep.subr.bf16.mxu0 0
    %208 = vmatpush1.bf16.msra.mxu0 0
    %209 = vmatprep.subr.bf16.mxu0 0
    %210 = vmatpush1.bf16.msra.mxu0 0
    %211 = vmatprep.subr.bf16.mxu0 0
    %212 = vmatpush1.bf16.msra.mxu0 %v192
    %213 = vmatprep.subr.bf16.mxu0 0
    %214 = vmatpush1.bf16.msra.mxu0 %v191
    %215 = vmatprep.subr.bf16.mxu0 0
    %216 = vmatpush2.bf16.msra.mxu0 0
    %217 = vmatprep.subr.bf16.mxu0 0
    %218 = vmatpush2.bf16.msra.mxu0 0
    %219 = vmatprep.subr.bf16.mxu0 0
    %220 = vmatpush2.bf16.msra.mxu0 0
    %221 = vmatprep.subr.bf16.mxu0 0
    %222 = vmatpush2.bf16.msra.mxu0 0
    %223 = vmatprep.subr.bf16.mxu0 0
    %224 = vmatpush2.bf16.msra.mxu0 0
    %225 = vmatprep.subr.bf16.mxu0 0
    %226 = vmatpush2.bf16.msra.mxu0 0
    %227 = vmatprep.subr.bf16.mxu0 0
    %228 = vmatpush2.bf16.msra.mxu0 0
    %229 = vmatprep.subr.bf16.mxu0 0
    %230 = vmatpush2.bf16.msra.mxu0 0
    %231 = vmatprep.mubr.bf16.mxu0 0
    %232 = vmatmul.mubr.bf16.gmra.mxu0 %v197
    %v233 = vpop.f32.mrf.mxu0
    %v234 = vadd.f32 0.0, %v233
    %v235 = vpop.f32.mrf.mxu0
    %v236 = vpop.f32.mrf.mxu0
    %v237 = vpop.f32.mrf.mxu0
    %238 = vdwg.mxu0
    %v239 = vadd.f32 %v182, %v234
    %v240 = vxor.u32 %v239, 2147483648
    %v241 = vmul.f32 %v240, 1.442695
    %v242 = vpow.pop %v241
    %v243 = vadd.f32 %v242, 1.0
    %v244 = vrcp.pop %v243
    %v245 = vmul.f32 1.0, %v244
    %v246 = vtanh.pop %v239
    %v247 = vmul.f32 %v245, 0.0
    %249 = vrot.lane.b32.xlu0 %v246, 32
    %v250 = vpop.permute.xlu0 %249
    %v252 = vmul.f32 %v245, %v250
    %254 = vrot.lane.b32.xlu0 %v252, 32
    %v255 = vpop.permute.xlu0 %254
    %v257 = vadd.f32 %v247, %v255
    %v258 = vtanh.pop %v257
    %260 = vrot.lane.b32.xlu0 %v258, 32
    %v261 = vpop.permute.xlu0 %260
    %v263 = vmul.f32 %v245, %v261
    %v264 = vpack.c.bf16 %v263, %v263
    %v266 = vunpack.c.l.b16 %v264
    %v267 = vpack.c.b16 %v266, %v266
    %268 = vrot.lane.b32.xlu0 %v267, 64
    %v269 = vpop.permute.xlu0 %268
    %vm271 = vcmask 257024
    %272 = vst.msk [vmem:[#allocation3] sm:$0xf] %vm271, %v269
    %s273 = scalar_lea.vmem [#allocation2], 8
    %v274 = vld [vmem:[%s273] sm:$0xff]
    %275 = vrot.lane.b32.xlu0 %v264, 64
    %v276 = vpop.permute.xlu0 %275
    %v278 = vsel %vm195, %v276, 0
    %280 = vmatprep.subr.bf16.mxu0 0
    %281 = vmatpush1.bf16.msra.mxu0 0
    %282 = vmatprep.subr.bf16.mxu0 0
    %283 = vmatpush1.bf16.msra.mxu0 0
    %284 = vmatprep.subr.bf16.mxu0 0
    %285 = vmatpush1.bf16.msra.mxu0 0
    %286 = vmatprep.subr.bf16.mxu0 0
    %287 = vmatpush1.bf16.msra.mxu0 0
    %288 = vmatprep.subr.bf16.mxu0 0
    %289 = vmatpush1.bf16.msra.mxu0 0
    %290 = vmatprep.subr.bf16.mxu0 0
    %291 = vmatpush1.bf16.msra.mxu0 0
    %292 = vmatprep.subr.bf16.mxu0 0
    %293 = vmatpush1.bf16.msra.mxu0 %v192
    %294 = vmatprep.subr.bf16.mxu0 0
    %295 = vmatpush1.bf16.msra.mxu0 %v191
    %296 = vmatprep.subr.bf16.mxu0 0
    %297 = vmatpush2.bf16.msra.mxu0 0
    %298 = vmatprep.subr.bf16.mxu0 0
    %299 = vmatpush2.bf16.msra.mxu0 0
    %300 = vmatprep.subr.bf16.mxu0 0
    %301 = vmatpush2.bf16.msra.mxu0 0
    %302 = vmatprep.subr.bf16.mxu0 0
    %303 = vmatpush2.bf16.msra.mxu0 0
    %304 = vmatprep.subr.bf16.mxu0 0
    %305 = vmatpush2.bf16.msra.mxu0 0
    %306 = vmatprep.subr.bf16.mxu0 0
    %307 = vmatpush2.bf16.msra.mxu0 0
    %308 = vmatprep.subr.bf16.mxu0 0
    %309 = vmatpush2.bf16.msra.mxu0 0
    %310 = vmatprep.subr.bf16.mxu0 0
    %311 = vmatpush2.bf16.msra.mxu0 0
    %312 = vmatprep.mubr.bf16.mxu0 0
    %313 = vmatmul.mubr.bf16.gmra.mxu0 %v278
    %v314 = vpop.f32.mrf.mxu0
    %v315 = vadd.f32 0.0, %v314
    %v316 = vpop.f32.mrf.mxu0
    %v317 = vpop.f32.mrf.mxu0
    %v318 = vpop.f32.mrf.mxu0
    %319 = vdwg.mxu0
    %v320 = vadd.f32 %v274, %v315
    %v321 = vxor.u32 %v320, 2147483648
    %v322 = vmul.f32 %v321, 1.442695
    %v323 = vpow.pop %v322
    %v324 = vadd.f32 %v323, 1.0
    %v325 = vrcp.pop %v324
    %v326 = vmul.f32 1.0, %v325
    %v327 = vtanh.pop %v320
    %v328 = vmul.f32 %v326, %v257
    %330 = vrot.lane.b32.xlu0 %v327, 32
    %v331 = vpop.permute.xlu0 %330
    %v333 = vmul.f32 %v326, %v331
    %335 = vrot.lane.b32.xlu0 %v333, 32
    %v336 = vpop.permute.xlu0 %335
    %v338 = vadd.f32 %v328, %v336
    %v339 = vtanh.pop %v338
    %341 = vrot.lane.b32.xlu0 %v339, 32
    %v342 = vpop.permute.xlu0 %341
    %v344 = vmul.f32 %v326, %v342
    %v345 = vpack.c.bf16 %v344, %v344
    %v347 = vunpack.c.l.b16 %v345
    %v348 = vpack.c.b16 %v347, %v347
    %349 = vrot.lane.b32.xlu0 %v348, 64
    %v350 = vpop.permute.xlu0 %349
    %s352 = scalar_lea.vmem [#allocation3], 4
    %353 = vst.msk [vmem:[%s352] sm:$0xf] %vm271, %v350
    %s354 = scalar_lea.vmem [#allocation2], 16
    %v355 = vld [vmem:[%s354] sm:$0xff]
    %356 = vrot.lane.b32.xlu0 %v345, 64
    %v357 = vpop.permute.xlu0 %356
    %v359 = vsel %vm195, %v357, 0
    %361 = vmatprep.subr.bf16.mxu0 0
    %362 = vmatpush1.bf16.msra.mxu0 0
    %363 = vmatprep.subr.bf16.mxu0 0
    %364 = vmatpush1.bf16.msra.mxu0 0
    %365 = vmatprep.subr.bf16.mxu0 0
    %366 = vmatpush1.bf16.msra.mxu0 0
    %367 = vmatprep.subr.bf16.mxu0 0
    %368 = vmatpush1.bf16.msra.mxu0 0
    %369 = vmatprep.subr.bf16.mxu0 0
    %370 = vmatpush1.bf16.msra.mxu0 0
    %371 = vmatprep.subr.bf16.mxu0 0
    %372 = vmatpush1.bf16.msra.mxu0 0
    %373 = vmatprep.subr.bf16.mxu0 0
    %374 = vmatpush1.bf16.msra.mxu0 %v192
    %375 = vmatprep.subr.bf16.mxu0 0
    %376 = vmatpush1.bf16.msra.mxu0 %v191
    %377 = vmatprep.subr.bf16.mxu0 0
    %378 = vmatpush2.bf16.msra.mxu0 0
    %379 = vmatprep.subr.bf16.mxu0 0
    %380 = vmatpush2.bf16.msra.mxu0 0
    %381 = vmatprep.subr.bf16.mxu0 0
    %382 = vmatpush2.bf16.msra.mxu0 0
    %383 = vmatprep.subr.bf16.mxu0 0
    %384 = vmatpush2.bf16.msra.mxu0 0
    %385 = vmatprep.subr.bf16.mxu0 0
    %386 = vmatpush2.bf16.msra.mxu0 0
    %387 = vmatprep.subr.bf16.mxu0 0
    %388 = vmatpush2.bf16.msra.mxu0 0
    %389 = vmatprep.subr.bf16.mxu0 0
    %390 = vmatpush2.bf16.msra.mxu0 0
    %391 = vmatprep.subr.bf16.mxu0 0
    %392 = vmatpush2.bf16.msra.mxu0 0
    %393 = vmatprep.mubr.bf16.mxu0 0
    %394 = vmatmul.mubr.bf16.gmra.mxu0 %v359
    %v395 = vpop.f32.mrf.mxu0
    %v396 = vadd.f32 0.0, %v395
    %v397 = vpop.f32.mrf.mxu0
    %v398 = vpop.f32.mrf.mxu0
    %v399 = vpop.f32.mrf.mxu0
    %400 = vdwg.mxu0
    %v401 = vadd.f32 %v355, %v396
    %v402 = vxor.u32 %v401, 2147483648
    %v403 = vmul.f32 %v402, 1.442695
    %v404 = vpow.pop %v403
    %v405 = vadd.f32 %v404, 1.0
    %v406 = vrcp.pop %v405
    %v407 = vmul.f32 1.0, %v406
    %v408 = vtanh.pop %v401
    %v409 = vmul.f32 %v407, %v338
    %411 = vrot.lane.b32.xlu0 %v408, 32
    %v412 = vpop.permute.xlu0 %411
    %v414 = vmul.f32 %v407, %v412
    %416 = vrot.lane.b32.xlu0 %v414, 32
    %v417 = vpop.permute.xlu0 %416
    %v419 = vadd.f32 %v409, %v417
    %v420 = vtanh.pop %v419
    %422 = vrot.lane.b32.xlu0 %v420, 32
    %v423 = vpop.permute.xlu0 %422
    %v425 = vmul.f32 %v407, %v423
    %v426 = vpack.c.bf16 %v425, %v425
    %v428 = vunpack.c.l.b16 %v426
    %v429 = vpack.c.b16 %v428, %v428
    %430 = vrot.lane.b32.xlu0 %v429, 64
    %v431 = vpop.permute.xlu0 %430
    %s433 = scalar_lea.vmem [#allocation3], 8
    %434 = vst.msk [vmem:[%s433] sm:$0xf] %vm271, %v431
    %s435 = scalar_lea.vmem [#allocation2], 24
    %v436 = vld [vmem:[%s435] sm:$0xff]
    %437 = vrot.lane.b32.xlu0 %v426, 64
    %v438 = vpop.permute.xlu0 %437
    %v440 = vsel %vm195, %v438, 0
    %442 = vmatprep.subr.bf16.mxu0 0
    %443 = vmatpush1.bf16.msra.mxu0 0
    %444 = vmatprep.subr.bf16.mxu0 0
    %445 = vmatpush1.bf16.msra.mxu0 0
    %446 = vmatprep.subr.bf16.mxu0 0
    %447 = vmatpush1.bf16.msra.mxu0 0
    %448 = vmatprep.subr.bf16.mxu0 0
    %449 = vmatpush1.bf16.msra.mxu0 0
    %450 = vmatprep.subr.bf16.mxu0 0
    %451 = vmatpush1.bf16.msra.mxu0 0
    %452 = vmatprep.subr.bf16.mxu0 0
    %453 = vmatpush1.bf16.msra.mxu0 0
    %454 = vmatprep.subr.bf16.mxu0 0
    %455 = vmatpush1.bf16.msra.mxu0 %v192
    %456 = vmatprep.subr.bf16.mxu0 0
    %457 = vmatpush1.bf16.msra.mxu0 %v191
    %458 = vmatprep.subr.bf16.mxu0 0
    %459 = vmatpush2.bf16.msra.mxu0 0
    %460 = vmatprep.subr.bf16.mxu0 0
    %461 = vmatpush2.bf16.msra.mxu0 0
    %462 = vmatprep.subr.bf16.mxu0 0
    %463 = vmatpush2.bf16.msra.mxu0 0
    %464 = vmatprep.subr.bf16.mxu0 0
    %465 = vmatpush2.bf16.msra.mxu0 0
    %466 = vmatprep.subr.bf16.mxu0 0
    %467 = vmatpush2.bf16.msra.mxu0 0
    %468 = vmatprep.subr.bf16.mxu0 0
    %469 = vmatpush2.bf16.msra.mxu0 0
    %470 = vmatprep.subr.bf16.mxu0 0
    %471 = vmatpush2.bf16.msra.mxu0 0
    %472 = vmatprep.subr.bf16.mxu0 0
    %473 = vmatpush2.bf16.msra.mxu0 0
    %474 = vmatprep.mubr.bf16.mxu0 0
    %475 = vmatmul.mubr.bf16.gmra.mxu0 %v440
    %v476 = vpop.f32.mrf.mxu0
    %v477 = vadd.f32 0.0, %v476
    %v478 = vpop.f32.mrf.mxu0
    %v479 = vpop.f32.mrf.mxu0
    %v480 = vpop.f32.mrf.mxu0
    %481 = vdwg.mxu0
    %v482 = vadd.f32 %v436, %v477
    %v483 = vxor.u32 %v482, 2147483648
    %v484 = vmul.f32 %v483, 1.442695
    %v485 = vpow.pop %v484
    %v486 = vadd.f32 %v485, 1.0
    %v487 = vrcp.pop %v486
    %v488 = vmul.f32 1.0, %v487
    %v489 = vtanh.pop %v482
    %v490 = vmul.f32 %v488, %v419
    %492 = vrot.lane.b32.xlu0 %v489, 32
    %v493 = vpop.permute.xlu0 %492
    %v495 = vmul.f32 %v488, %v493
    %497 = vrot.lane.b32.xlu0 %v495, 32
    %v498 = vpop.permute.xlu0 %497
    %v500 = vadd.f32 %v490, %v498
    %v501 = vtanh.pop %v500
    %503 = vrot.lane.b32.xlu0 %v501, 32
    %v504 = vpop.permute.xlu0 %503
    %v506 = vmul.f32 %v488, %v504
    %v507 = vpack.c.bf16 %v506, %v506
    %v509 = vunpack.c.l.b16 %v507
    %v510 = vpack.c.b16 %v509, %v509
    %511 = vrot.lane.b32.xlu0 %v510, 64
    %v512 = vpop.permute.xlu0 %511
    %s514 = scalar_lea.vmem [#allocation3], 12
    %515 = vst.msk [vmem:[%s514] sm:$0xf] %vm271, %v512
    %s516 = scalar_lea.vmem [#allocation2], 32
    %v517 = vld [vmem:[%s516] sm:$0xff]
    %518 = vrot.lane.b32.xlu0 %v507, 64
    %v519 = vpop.permute.xlu0 %518
    %v521 = vsel %vm195, %v519, 0
    %523 = vmatprep.subr.bf16.mxu0 0
    %524 = vmatpush1.bf16.msra.mxu0 0
    %525 = vmatprep.subr.bf16.mxu0 0
    %526 = vmatpush1.bf16.msra.mxu0 0
    %527 = vmatprep.subr.bf16.mxu0 0
    %528 = vmatpush1.bf16.msra.mxu0 0
    %529 = vmatprep.subr.bf16.mxu0 0
    %530 = vmatpush1.bf16.msra.mxu0 0
    %531 = vmatprep.subr.bf16.mxu0 0
    %532 = vmatpush1.bf16.msra.mxu0 0
    %533 = vmatprep.subr.bf16.mxu0 0
    %534 = vmatpush1.bf16.msra.mxu0 0
    %535 = vmatprep.subr.bf16.mxu0 0
    %536 = vmatpush1.bf16.msra.mxu0 %v192
    %537 = vmatprep.subr.bf16.mxu0 0
    %538 = vmatpush1.bf16.msra.mxu0 %v191
    %539 = vmatprep.subr.bf16.mxu0 0
    %540 = vmatpush2.bf16.msra.mxu0 0
    %541 = vmatprep.subr.bf16.mxu0 0
    %542 = vmatpush2.bf16.msra.mxu0 0
    %543 = vmatprep.subr.bf16.mxu0 0
    %544 = vmatpush2.bf16.msra.mxu0 0
    %545 = vmatprep.subr.bf16.mxu0 0
    %546 = vmatpush2.bf16.msra.mxu0 0
    %547 = vmatprep.subr.bf16.mxu0 0
    %548 = vmatpush2.bf16.msra.mxu0 0
    %549 = vmatprep.subr.bf16.mxu0 0
    %550 = vmatpush2.bf16.msra.mxu0 0
    %551 = vmatprep.subr.bf16.mxu0 0
    %552 = vmatpush2.bf16.msra.mxu0 0
    %553 = vmatprep.subr.bf16.mxu0 0
    %554 = vmatpush2.bf16.msra.mxu0 0
    %555 = vmatprep.mubr.bf16.mxu0 0
    %556 = vmatmul.mubr.bf16.gmra.mxu0 %v521
    %v557 = vpop.f32.mrf.mxu0
    %v558 = vadd.f32 0.0, %v557
    %v559 = vpop.f32.mrf.mxu0
    %v560 = vpop.f32.mrf.mxu0
    %v561 = vpop.f32.mrf.mxu0
    %562 = vdwg.mxu0
    %v563 = vadd.f32 %v517, %v558
    %v564 = vxor.u32 %v563, 2147483648
    %v565 = vmul.f32 %v564, 1.442695
    %v566 = vpow.pop %v565
    %v567 = vadd.f32 %v566, 1.0
    %v568 = vrcp.pop %v567
    %v569 = vmul.f32 1.0, %v568
    %v570 = vtanh.pop %v563
    %v571 = vmul.f32 %v569, %v500
    %573 = vrot.lane.b32.xlu0 %v570, 32
    %v574 = vpop.permute.xlu0 %573
    %v576 = vmul.f32 %v569, %v574
    %578 = vrot.lane.b32.xlu0 %v576, 32
    %v579 = vpop.permute.xlu0 %578
    %v581 = vadd.f32 %v571, %v579
    %v582 = vtanh.pop %v581
    %584 = vrot.lane.b32.xlu0 %v582, 32
    %v585 = vpop.permute.xlu0 %584
    %v587 = vmul.f32 %v569, %v585
    %v588 = vpack.c.bf16 %v587, %v587
    %v590 = vunpack.c.l.b16 %v588
    %v591 = vpack.c.b16 %v590, %v590
    %592 = vrot.lane.b32.xlu0 %v591, 64
    %v593 = vpop.permute.xlu0 %592
    %s595 = scalar_lea.vmem [#allocation3], 16
    %596 = vst.msk [vmem:[%s595] sm:$0xf] %vm271, %v593
    %s597 = scalar_lea.vmem [#allocation2], 40
    %v598 = vld [vmem:[%s597] sm:$0xff]
    %599 = vrot.lane.b32.xlu0 %v588, 64
    %v600 = vpop.permute.xlu0 %599
    %v602 = vsel %vm195, %v600, 0
    %604 = vmatprep.subr.bf16.mxu0 0
    %605 = vmatpush1.bf16.msra.mxu0 0
    %606 = vmatprep.subr.bf16.mxu0 0
    %607 = vmatpush1.bf16.msra.mxu0 0
    %608 = vmatprep.subr.bf16.mxu0 0
    %609 = vmatpush1.bf16.msra.mxu0 0
    %610 = vmatprep.subr.bf16.mxu0 0
    %611 = vmatpush1.bf16.msra.mxu0 0
    %612 = vmatprep.subr.bf16.mxu0 0
    %613 = vmatpush1.bf16.msra.mxu0 0
    %614 = vmatprep.subr.bf16.mxu0 0
    %615 = vmatpush1.bf16.msra.mxu0 0
    %616 = vmatprep.subr.bf16.mxu0 0
    %617 = vmatpush1.bf16.msra.mxu0 %v192
    %618 = vmatprep.subr.bf16.mxu0 0
    %619 = vmatpush1.bf16.msra.mxu0 %v191
    %620 = vmatprep.subr.bf16.mxu0 0
    %621 = vmatpush2.bf16.msra.mxu0 0
    %622 = vmatprep.subr.bf16.mxu0 0
    %623 = vmatpush2.bf16.msra.mxu0 0
    %624 = vmatprep.subr.bf16.mxu0 0
    %625 = vmatpush2.bf16.msra.mxu0 0
    %626 = vmatprep.subr.bf16.mxu0 0
    %627 = vmatpush2.bf16.msra.mxu0 0
    %628 = vmatprep.subr.bf16.mxu0 0
    %629 = vmatpush2.bf16.msra.mxu0 0
    %630 = vmatprep.subr.bf16.mxu0 0
    %631 = vmatpush2.bf16.msra.mxu0 0
    %632 = vmatprep.subr.bf16.mxu0 0
    %633 = vmatpush2.bf16.msra.mxu0 0
    %634 = vmatprep.subr.bf16.mxu0 0
    %635 = vmatpush2.bf16.msra.mxu0 0
    %636 = vmatprep.mubr.bf16.mxu0 0
    %637 = vmatmul.mubr.bf16.gmra.mxu0 %v602
    %v638 = vpop.f32.mrf.mxu0
    %v639 = vadd.f32 0.0, %v638
    %v640 = vpop.f32.mrf.mxu0
    %v641 = vpop.f32.mrf.mxu0
    %v642 = vpop.f32.mrf.mxu0
    %643 = vdwg.mxu0
    %v644 = vadd.f32 %v598, %v639
    %v645 = vxor.u32 %v644, 2147483648
    %v646 = vmul.f32 %v645, 1.442695
    %v647 = vpow.pop %v646
    %v648 = vadd.f32 %v647, 1.0
    %v649 = vrcp.pop %v648
    %v650 = vmul.f32 1.0, %v649
    %v651 = vtanh.pop %v644
    %v652 = vmul.f32 %v650, %v581
    %654 = vrot.lane.b32.xlu0 %v651, 32
    %v655 = vpop.permute.xlu0 %654
    %v657 = vmul.f32 %v650, %v655
    %659 = vrot.lane.b32.xlu0 %v657, 32
    %v660 = vpop.permute.xlu0 %659
    %v662 = vadd.f32 %v652, %v660
    %v663 = vtanh.pop %v662
    %665 = vrot.lane.b32.xlu0 %v663, 32
    %v666 = vpop.permute.xlu0 %665
    %v668 = vmul.f32 %v650, %v666
    %v669 = vpack.c.bf16 %v668, %v668
    %v671 = vunpack.c.l.b16 %v669
    %v672 = vpack.c.b16 %v671, %v671
    %673 = vrot.lane.b32.xlu0 %v672, 64
    %v674 = vpop.permute.xlu0 %673
    %s676 = scalar_lea.vmem [#allocation3], 20
    %677 = vst.msk [vmem:[%s676] sm:$0xf] %vm271, %v674
    %s678 = scalar_lea.vmem [#allocation2], 48
    %v679 = vld [vmem:[%s678] sm:$0xff]
    %680 = vrot.lane.b32.xlu0 %v669, 64
    %v681 = vpop.permute.xlu0 %680
    %v683 = vsel %vm195, %v681, 0
    %685 = vmatprep.subr.bf16.mxu0 0
    %686 = vmatpush1.bf16.msra.mxu0 0
    %687 = vmatprep.subr.bf16.mxu0 0
    %688 = vmatpush1.bf16.msra.mxu0 0
    %689 = vmatprep.subr.bf16.mxu0 0
    %690 = vmatpush1.bf16.msra.mxu0 0
    %691 = vmatprep.subr.bf16.mxu0 0
    %692 = vmatpush1.bf16.msra.mxu0 0
    %693 = vmatprep.subr.bf16.mxu0 0
    %694 = vmatpush1.bf16.msra.mxu0 0
    %695 = vmatprep.subr.bf16.mxu0 0
    %696 = vmatpush1.bf16.msra.mxu0 0
    %697 = vmatprep.subr.bf16.mxu0 0
    %698 = vmatpush1.bf16.msra.mxu0 %v192
    %699 = vmatprep.subr.bf16.mxu0 0
    %700 = vmatpush1.bf16.msra.mxu0 %v191
    %701 = vmatprep.subr.bf16.mxu0 0
    %702 = vmatpush2.bf16.msra.mxu0 0
    %703 = vmatprep.subr.bf16.mxu0 0
    %704 = vmatpush2.bf16.msra.mxu0 0
    %705 = vmatprep.subr.bf16.mxu0 0
    %706 = vmatpush2.bf16.msra.mxu0 0
    %707 = vmatprep.subr.bf16.mxu0 0
    %708 = vmatpush2.bf16.msra.mxu0 0
    %709 = vmatprep.subr.bf16.mxu0 0
    %710 = vmatpush2.bf16.msra.mxu0 0
    %711 = vmatprep.subr.bf16.mxu0 0
    %712 = vmatpush2.bf16.msra.mxu0 0
    %713 = vmatprep.subr.bf16.mxu0 0
    %714 = vmatpush2.bf16.msra.mxu0 0
    %715 = vmatprep.subr.bf16.mxu0 0
    %716 = vmatpush2.bf16.msra.mxu0 0
    %717 = vmatprep.mubr.bf16.mxu0 0
    %718 = vmatmul.mubr.bf16.gmra.mxu0 %v683
    %v719 = vpop.f32.mrf.mxu0
    %v720 = vadd.f32 0.0, %v719
    %v721 = vpop.f32.mrf.mxu0
    %v722 = vpop.f32.mrf.mxu0
    %v723 = vpop.f32.mrf.mxu0
    %724 = vdwg.mxu0
    %v725 = vadd.f32 %v679, %v720
    %v726 = vxor.u32 %v725, 2147483648
    %v727 = vmul.f32 %v726, 1.442695
    %v728 = vpow.pop %v727
    %v729 = vadd.f32 %v728, 1.0
    %v730 = vrcp.pop %v729
    %v731 = vmul.f32 1.0, %v730
    %v732 = vtanh.pop %v725
    %v733 = vmul.f32 %v731, %v662
    %735 = vrot.lane.b32.xlu0 %v732, 32
    %v736 = vpop.permute.xlu0 %735
    %v738 = vmul.f32 %v731, %v736
    %740 = vrot.lane.b32.xlu0 %v738, 32
    %v741 = vpop.permute.xlu0 %740
    %v743 = vadd.f32 %v733, %v741
    %v744 = vtanh.pop %v743
    %746 = vrot.lane.b32.xlu0 %v744, 32
    %v747 = vpop.permute.xlu0 %746
    %v749 = vmul.f32 %v731, %v747
    %v750 = vpack.c.bf16 %v749, %v749
    %v752 = vunpack.c.l.b16 %v750
    %v753 = vpack.c.b16 %v752, %v752
    %754 = vrot.lane.b32.xlu0 %v753, 64
    %v755 = vpop.permute.xlu0 %754
    %s757 = scalar_lea.vmem [#allocation3], 24
    %758 = vst.msk [vmem:[%s757] sm:$0xf] %vm271, %v755
    %s759 = scalar_lea.vmem [#allocation2], 56
    %v760 = vld [vmem:[%s759] sm:$0xff]
    %761 = vrot.lane.b32.xlu0 %v750, 64
    %v762 = vpop.permute.xlu0 %761
    %v764 = vsel %vm195, %v762, 0
    %766 = vmatprep.subr.bf16.mxu0 0
    %767 = vmatpush1.bf16.msra.mxu0 0
    %768 = vmatprep.subr.bf16.mxu0 0
    %769 = vmatpush1.bf16.msra.mxu0 0
    %770 = vmatprep.subr.bf16.mxu0 0
    %771 = vmatpush1.bf16.msra.mxu0 0
    %772 = vmatprep.subr.bf16.mxu0 0
    %773 = vmatpush1.bf16.msra.mxu0 0
    %774 = vmatprep.subr.bf16.mxu0 0
    %775 = vmatpush1.bf16.msra.mxu0 0
    %776 = vmatprep.subr.bf16.mxu0 0
    %777 = vmatpush1.bf16.msra.mxu0 0
    %778 = vmatprep.subr.bf16.mxu0 0
    %779 = vmatpush1.bf16.msra.mxu0 %v192
    %780 = vmatprep.subr.bf16.mxu0 0
    %781 = vmatpush1.bf16.msra.mxu0 %v191
    %782 = vmatprep.subr.bf16.mxu0 0
    %783 = vmatpush2.bf16.msra.mxu0 0
    %784 = vmatprep.subr.bf16.mxu0 0
    %785 = vmatpush2.bf16.msra.mxu0 0
    %786 = vmatprep.subr.bf16.mxu0 0
    %787 = vmatpush2.bf16.msra.mxu0 0
    %788 = vmatprep.subr.bf16.mxu0 0
    %789 = vmatpush2.bf16.msra.mxu0 0
    %790 = vmatprep.subr.bf16.mxu0 0
    %791 = vmatpush2.bf16.msra.mxu0 0
    %792 = vmatprep.subr.bf16.mxu0 0
    %793 = vmatpush2.bf16.msra.mxu0 0
    %794 = vmatprep.subr.bf16.mxu0 0
    %795 = vmatpush2.bf16.msra.mxu0 0
    %796 = vmatprep.subr.bf16.mxu0 0
    %797 = vmatpush2.bf16.msra.mxu0 0
    %798 = vmatprep.mubr.bf16.mxu0 0
    %799 = vmatmul.mubr.bf16.gmra.mxu0 %v764
    %v800 = vpop.f32.mrf.mxu0
    %v801 = vadd.f32 0.0, %v800
    %v802 = vpop.f32.mrf.mxu0
    %v803 = vpop.f32.mrf.mxu0
    %v804 = vpop.f32.mrf.mxu0
    %805 = vdwg.mxu0
    %v806 = vadd.f32 %v760, %v801
    %v807 = vxor.u32 %v806, 2147483648
    %v808 = vmul.f32 %v807, 1.442695
    %v809 = vpow.pop %v808
    %v810 = vadd.f32 %v809, 1.0
    %v811 = vrcp.pop %v810
    %v812 = vmul.f32 1.0, %v811
    %v813 = vtanh.pop %v806
    %v814 = vmul.f32 %v812, %v743
    %816 = vrot.lane.b32.xlu0 %v813, 32
    %v817 = vpop.permute.xlu0 %816
    %v819 = vmul.f32 %v812, %v817
    %821 = vrot.lane.b32.xlu0 %v819, 32
    %v822 = vpop.permute.xlu0 %821
    %v824 = vadd.f32 %v814, %v822
    %v825 = vtanh.pop %v824
    %827 = vrot.lane.b32.xlu0 %v825, 32
    %v828 = vpop.permute.xlu0 %827
    %v830 = vmul.f32 %v812, %v828
    %v831 = vpack.c.bf16 %v830, %v830
    %v833 = vunpack.c.l.b16 %v831
    %v834 = vpack.c.b16 %v833, %v833
    %835 = vrot.lane.b32.xlu0 %v834, 64
    %v836 = vpop.permute.xlu0 %835
    %s838 = scalar_lea.vmem [#allocation3], 28
    %839 = vst.msk [vmem:[%s838] sm:$0xf] %vm271, %v836
    %v840 = vld [vmem:[#allocation3] sm:$0xf]
    %v841 = vld [vmem:[#allocation3 + $0x4] sm:$0xf]
    %v842 = vld [vmem:[#allocation3 + $0x8] sm:$0xf]
    %v843 = vld [vmem:[#allocation3 + $0xc] sm:$0xf]
    %v844 = vld [vmem:[#allocation3 + $0x10] sm:$0xf]
    %v845 = vld [vmem:[#allocation3 + $0x14] sm:$0xf]
    %v846 = vld [vmem:[#allocation3 + $0x18] sm:$0xf]
    %v847 = vld [vmem:[#allocation3 + $0x1c] sm:$0xf]
    %v848 = vld [vmem:[%s4] sm:$0xf]
    %v849 = vld [vmem:[%s4 + $0x4] sm:$0xf]
    %v850 = vld [vmem:[%s4 + $0x8] sm:$0xf]
    %v851 = vld [vmem:[%s4 + $0xc] sm:$0xf]
    %v852 = vld [vmem:[%s6] sm:$0x1]
    %v854 = vlaneseq
    %v855 = vshrl.u32 %v854, 7
    %v856 = vsub.s32 0, %v855
    %v857 = vrot.slane %v852, %v856
    %v867 = vunpack.c.l.b16 %v840
    %v868 = vunpack.c.l.b16 %v841
    %v869 = vunpack.c.l.b16 %v842
    %v870 = vunpack.c.l.b16 %v843
    %v871 = vunpack.c.l.b16 %v844
    %v872 = vunpack.c.l.b16 %v845
    %v873 = vunpack.c.l.b16 %v846
    %v874 = vunpack.c.l.b16 %v847
    %v875 = vpack.c.b16 %v868, %v867
    %v876 = vpack.c.b16 %v870, %v869
    %v877 = vpack.c.b16 %v872, %v871
    %v878 = vpack.c.b16 %v874, %v873
    %v883 = vunpack.c.l.b16 %v848
    %v884 = vunpack.c.l.b16 %v849
    %v885 = vunpack.c.l.b16 %v850
    %v886 = vunpack.c.l.b16 %v851
    %v887 = vpack.c.b16 %v884, %v883
    %v888 = vpack.c.b16 %v886, %v885
    %v892 = vsel %vm195, %v875, 0
    %v895 = vsel %vm195, %v876, 0
    %v898 = vsel %vm195, %v877, 0
    %v901 = vsel %vm195, %v878, 0
    %903 = vmatprep.subr.bf16.mxu0 0
    %904 = vmatpush1.bf16.msra.mxu0 0
    %905 = vmatprep.subr.bf16.mxu0 0
    %906 = vmatpush1.bf16.msra.mxu0 0
    %907 = vmatprep.subr.bf16.mxu0 0
    %908 = vmatpush1.bf16.msra.mxu0 0
    %909 = vmatprep.subr.bf16.mxu0 0
    %910 = vmatpush1.bf16.msra.mxu0 0
    %911 = vmatprep.subr.bf16.mxu0 0
    %912 = vmatpush1.bf16.msra.mxu0 0
    %913 = vmatprep.subr.bf16.mxu0 0
    %914 = vmatpush1.bf16.msra.mxu0 0
    %915 = vmatprep.subr.bf16.mxu0 0
    %916 = vmatpush1.bf16.msra.mxu0 %v888
    %917 = vmatprep.subr.bf16.mxu0 0
    %918 = vmatpush1.bf16.msra.mxu0 %v887
    %919 = vmatprep.subr.bf16.mxu0 0
    %920 = vmatpush2.bf16.msra.mxu0 0
    %921 = vmatprep.subr.bf16.mxu0 0
    %922 = vmatpush2.bf16.msra.mxu0 0
    %923 = vmatprep.subr.bf16.mxu0 0
    %924 = vmatpush2.bf16.msra.mxu0 0
    %925 = vmatprep.subr.bf16.mxu0 0
    %926 = vmatpush2.bf16.msra.mxu0 0
    %927 = vmatprep.subr.bf16.mxu0 0
    %928 = vmatpush2.bf16.msra.mxu0 0
    %929 = vmatprep.subr.bf16.mxu0 0
    %930 = vmatpush2.bf16.msra.mxu0 0
    %931 = vmatprep.subr.bf16.mxu0 0
    %932 = vmatpush2.bf16.msra.mxu0 0
    %933 = vmatprep.subr.bf16.mxu0 0
    %934 = vmatpush2.bf16.msra.mxu0 0
    %935 = vmatprep.mubr.bf16.mxu0 0
    %936 = vmatmul.mubr.bf16.gmra.mxu0 %v892
    %v937 = vpop.f32.mrf.mxu0
    %v938 = vadd.f32 %v857, %v937
    %v939 = vpop.f32.mrf.mxu0
    %v940 = vpop.f32.mrf.mxu0
    %v941 = vadd.f32 %v857, %v940
    %v942 = vpop.f32.mrf.mxu0
    %943 = vmatprep.mubr.bf16.mxu0 0
    %944 = vmatmul.mubr.bf16.gmra.mxu0 %v895
    %v945 = vpop.f32.mrf.mxu0
    %v946 = vadd.f32 %v857, %v945
    %v947 = vpop.f32.mrf.mxu0
    %v948 = vpop.f32.mrf.mxu0
    %v949 = vadd.f32 %v857, %v948
    %v950 = vpop.f32.mrf.mxu0
    %951 = vmatprep.mubr.bf16.mxu0 0
    %952 = vmatmul.mubr.bf16.gmra.mxu0 %v898
    %v953 = vpop.f32.mrf.mxu0
    %v954 = vadd.f32 %v857, %v953
    %v955 = vpop.f32.mrf.mxu0
    %v956 = vpop.f32.mrf.mxu0
    %v957 = vadd.f32 %v857, %v956
    %v958 = vpop.f32.mrf.mxu0
    %959 = vmatprep.mubr.bf16.mxu0 0
    %960 = vmatmul.mubr.bf16.gmra.mxu0 %v901
    %v961 = vpop.f32.mrf.mxu0
    %v962 = vadd.f32 %v857, %v961
    %v963 = vpop.f32.mrf.mxu0
    %v964 = vpop.f32.mrf.mxu0
    %v965 = vadd.f32 %v857, %v964
    %v966 = vpop.f32.mrf.mxu0
    %967 = vdwg.mxu0
    %968 = vst [vmem:[#allocation2] sm:$0xff] %v938
    %969 = vst [vmem:[#allocation2 + $0x8] sm:$0xff] %v941
    %970 = vst [vmem:[#allocation2 + $0x10] sm:$0xff] %v946
    %971 = vst [vmem:[#allocation2 + $0x18] sm:$0xff] %v949
    %972 = vst [vmem:[#allocation2 + $0x20] sm:$0xff] %v954
    %973 = vst [vmem:[#allocation2 + $0x28] sm:$0xff] %v957
    %974 = vst [vmem:[#allocation2 + $0x30] sm:$0xff] %v962
    %975 = vst [vmem:[#allocation2 + $0x38] sm:$0xff] %v965
    %v976 = vld [vmem:[%s5] sm:$0xf]
    %v977 = vld [vmem:[%s5 + $0x4] sm:$0xf]
    %v978 = vld [vmem:[%s5 + $0x8] sm:$0xf]
    %v979 = vld [vmem:[%s5 + $0xc] sm:$0xf]
    %v980 = vld [vmem:[#allocation2] sm:$0xff]
    %v985 = vunpack.c.l.b16 %v976
    %v986 = vunpack.c.l.b16 %v977
    %v987 = vunpack.c.l.b16 %v978
    %v988 = vunpack.c.l.b16 %v979
    %v989 = vpack.c.b16 %v986, %v985
    %v990 = vpack.c.b16 %v988, %v987
    %993 = vmatprep.subr.bf16.mxu0 0
    %994 = vmatpush1.bf16.msra.mxu0 0
    %995 = vmatprep.subr.bf16.mxu0 0
    %996 = vmatpush1.bf16.msra.mxu0 0
    %997 = vmatprep.subr.bf16.mxu0 0
    %998 = vmatpush1.bf16.msra.mxu0 0
    %999 = vmatprep.subr.bf16.mxu0 0
    %1000 = vmatpush1.bf16.msra.mxu0 0
    %1001 = vmatprep.subr.bf16.mxu0 0
    %1002 = vmatpush1.bf16.msra.mxu0 0
    %1003 = vmatprep.subr.bf16.mxu0 0
    %1004 = vmatpush1.bf16.msra.mxu0 0
    %1005 = vmatprep.subr.bf16.mxu0 0
    %1006 = vmatpush1.bf16.msra.mxu0 %v990
    %1007 = vmatprep.subr.bf16.mxu0 0
    %1008 = vmatpush1.bf16.msra.mxu0 %v989
    %1009 = vmatprep.subr.bf16.mxu0 0
    %1010 = vmatpush2.bf16.msra.mxu0 0
    %1011 = vmatprep.subr.bf16.mxu0 0
    %1012 = vmatpush2.bf16.msra.mxu0 0
    %1013 = vmatprep.subr.bf16.mxu0 0
    %1014 = vmatpush2.bf16.msra.mxu0 0
    %1015 = vmatprep.subr.bf16.mxu0 0
    %1016 = vmatpush2.bf16.msra.mxu0 0
    %1017 = vmatprep.subr.bf16.mxu0 0
    %1018 = vmatpush2.bf16.msra.mxu0 0
    %1019 = vmatprep.subr.bf16.mxu0 0
    %1020 = vmatpush2.bf16.msra.mxu0 0
    %1021 = vmatprep.subr.bf16.mxu0 0
    %1022 = vmatpush2.bf16.msra.mxu0 0
    %1023 = vmatprep.subr.bf16.mxu0 0
    %1024 = vmatpush2.bf16.msra.mxu0 0
    %1025 = vmatprep.mubr.bf16.mxu0 0
    %1026 = vmatmul.mubr.bf16.gmra.mxu0 %v197
    %v1027 = vpop.f32.mrf.mxu0
    %v1028 = vadd.f32 0.0, %v1027
    %v1029 = vpop.f32.mrf.mxu0
    %v1030 = vpop.f32.mrf.mxu0
    %v1031 = vpop.f32.mrf.mxu0
    %1032 = vdwg.mxu0
    %v1033 = vadd.f32 %v980, %v1028
    %v1034 = vxor.u32 %v1033, 2147483648
    %v1035 = vmul.f32 %v1034, 1.442695
    %v1036 = vpow.pop %v1035
    %v1037 = vadd.f32 %v1036, 1.0
    %v1038 = vrcp.pop %v1037
    %v1039 = vmul.f32 1.0, %v1038
    %v1040 = vtanh.pop %v1033
    %v1041 = vmul.f32 %v1039, 0.0
    %1043 = vrot.lane.b32.xlu0 %v1040, 32
    %v1044 = vpop.permute.xlu0 %1043
    %v1046 = vmul.f32 %v1039, %v1044
    %1048 = vrot.lane.b32.xlu0 %v1046, 32
    %v1049 = vpop.permute.xlu0 %1048
    %v1051 = vadd.f32 %v1041, %v1049
    %v1052 = vtanh.pop %v1051
    %1054 = vrot.lane.b32.xlu0 %v1052, 32
    %v1055 = vpop.permute.xlu0 %1054
    %v1057 = vmul.f32 %v1039, %v1055
    %v1058 = vld [vmem:[%s273] sm:$0xff]
    %v1059 = vpack.c.bf16 %v1057, %v1057
    %1061 = vrot.lane.b32.xlu0 %v1059, 64
    %v1062 = vpop.permute.xlu0 %1061
    %v1064 = vsel %vm195, %v1062, 0
    %1066 = vmatprep.subr.bf16.mxu0 0
    %1067 = vmatpush1.bf16.msra.mxu0 0
    %1068 = vmatprep.subr.bf16.mxu0 0
    %1069 = vmatpush1.bf16.msra.mxu0 0
    %1070 = vmatprep.subr.bf16.mxu0 0
    %1071 = vmatpush1.bf16.msra.mxu0 0
    %1072 = vmatprep.subr.bf16.mxu0 0
    %1073 = vmatpush1.bf16.msra.mxu0 0
    %1074 = vmatprep.subr.bf16.mxu0 0
    %1075 = vmatpush1.bf16.msra.mxu0 0
    %1076 = vmatprep.subr.bf16.mxu0 0
    %1077 = vmatpush1.bf16.msra.mxu0 0
    %1078 = vmatprep.subr.bf16.mxu0 0
    %1079 = vmatpush1.bf16.msra.mxu0 %v990
    %1080 = vmatprep.subr.bf16.mxu0 0
    %1081 = vmatpush1.bf16.msra.mxu0 %v989
    %1082 = vmatprep.subr.bf16.mxu0 0
    %1083 = vmatpush2.bf16.msra.mxu0 0
    %1084 = vmatprep.subr.bf16.mxu0 0
    %1085 = vmatpush2.bf16.msra.mxu0 0
    %1086 = vmatprep.subr.bf16.mxu0 0
    %1087 = vmatpush2.bf16.msra.mxu0 0
    %1088 = vmatprep.subr.bf16.mxu0 0
    %1089 = vmatpush2.bf16.msra.mxu0 0
    %1090 = vmatprep.subr.bf16.mxu0 0
    %1091 = vmatpush2.bf16.msra.mxu0 0
    %1092 = vmatprep.subr.bf16.mxu0 0
    %1093 = vmatpush2.bf16.msra.mxu0 0
    %1094 = vmatprep.subr.bf16.mxu0 0
    %1095 = vmatpush2.bf16.msra.mxu0 0
    %1096 = vmatprep.subr.bf16.mxu0 0
    %1097 = vmatpush2.bf16.msra.mxu0 0
    %1098 = vmatprep.mubr.bf16.mxu0 0
    %1099 = vmatmul.mubr.bf16.gmra.mxu0 %v1064
    %v1100 = vpop.f32.mrf.mxu0
    %v1101 = vadd.f32 0.0, %v1100
    %v1102 = vpop.f32.mrf.mxu0
    %v1103 = vpop.f32.mrf.mxu0
    %v1104 = vpop.f32.mrf.mxu0
    %1105 = vdwg.mxu0
    %v1106 = vadd.f32 %v1058, %v1101
    %v1107 = vxor.u32 %v1106, 2147483648
    %v1108 = vmul.f32 %v1107, 1.442695
    %v1109 = vpow.pop %v1108
    %v1110 = vadd.f32 %v1109, 1.0
    %v1111 = vrcp.pop %v1110
    %v1112 = vmul.f32 1.0, %v1111
    %v1113 = vtanh.pop %v1106
    %v1114 = vmul.f32 %v1112, %v1051
    %1116 = vrot.lane.b32.xlu0 %v1113, 32
    %v1117 = vpop.permute.xlu0 %1116
    %v1119 = vmul.f32 %v1112, %v1117
    %1121 = vrot.lane.b32.xlu0 %v1119, 32
    %v1122 = vpop.permute.xlu0 %1121
    %v1124 = vadd.f32 %v1114, %v1122
    %v1125 = vtanh.pop %v1124
    %1127 = vrot.lane.b32.xlu0 %v1125, 32
    %v1128 = vpop.permute.xlu0 %1127
    %v1130 = vmul.f32 %v1112, %v1128
    %v1131 = vld [vmem:[%s354] sm:$0xff]
    %v1132 = vpack.c.bf16 %v1130, %v1130
    %1134 = vrot.lane.b32.xlu0 %v1132, 64
    %v1135 = vpop.permute.xlu0 %1134
    %v1137 = vsel %vm195, %v1135, 0
    %1139 = vmatprep.subr.bf16.mxu0 0
    %1140 = vmatpush1.bf16.msra.mxu0 0
    %1141 = vmatprep.subr.bf16.mxu0 0
    %1142 = vmatpush1.bf16.msra.mxu0 0
    %1143 = vmatprep.subr.bf16.mxu0 0
    %1144 = vmatpush1.bf16.msra.mxu0 0
    %1145 = vmatprep.subr.bf16.mxu0 0
    %1146 = vmatpush1.bf16.msra.mxu0 0
    %1147 = vmatprep.subr.bf16.mxu0 0
    %1148 = vmatpush1.bf16.msra.mxu0 0
    %1149 = vmatprep.subr.bf16.mxu0 0
    %1150 = vmatpush1.bf16.msra.mxu0 0
    %1151 = vmatprep.subr.bf16.mxu0 0
    %1152 = vmatpush1.bf16.msra.mxu0 %v990
    %1153 = vmatprep.subr.bf16.mxu0 0
    %1154 = vmatpush1.bf16.msra.mxu0 %v989
    %1155 = vmatprep.subr.bf16.mxu0 0
    %1156 = vmatpush2.bf16.msra.mxu0 0
    %1157 = vmatprep.subr.bf16.mxu0 0
    %1158 = vmatpush2.bf16.msra.mxu0 0
    %1159 = vmatprep.subr.bf16.mxu0 0
    %1160 = vmatpush2.bf16.msra.mxu0 0
    %1161 = vmatprep.subr.bf16.mxu0 0
    %1162 = vmatpush2.bf16.msra.mxu0 0
    %1163 = vmatprep.subr.bf16.mxu0 0
    %1164 = vmatpush2.bf16.msra.mxu0 0
    %1165 = vmatprep.subr.bf16.mxu0 0
    %1166 = vmatpush2.bf16.msra.mxu0 0
    %1167 = vmatprep.subr.bf16.mxu0 0
    %1168 = vmatpush2.bf16.msra.mxu0 0
    %1169 = vmatprep.subr.bf16.mxu0 0
    %1170 = vmatpush2.bf16.msra.mxu0 0
    %1171 = vmatprep.mubr.bf16.mxu0 0
    %1172 = vmatmul.mubr.bf16.gmra.mxu0 %v1137
    %v1173 = vpop.f32.mrf.mxu0
    %v1174 = vadd.f32 0.0, %v1173
    %v1175 = vpop.f32.mrf.mxu0
    %v1176 = vpop.f32.mrf.mxu0
    %v1177 = vpop.f32.mrf.mxu0
    %1178 = vdwg.mxu0
    %v1179 = vadd.f32 %v1131, %v1174
    %v1180 = vxor.u32 %v1179, 2147483648
    %v1181 = vmul.f32 %v1180, 1.442695
    %v1182 = vpow.pop %v1181
    %v1183 = vadd.f32 %v1182, 1.0
    %v1184 = vrcp.pop %v1183
    %v1185 = vmul.f32 1.0, %v1184
    %v1186 = vtanh.pop %v1179
    %v1187 = vmul.f32 %v1185, %v1124
    %1189 = vrot.lane.b32.xlu0 %v1186, 32
    %v1190 = vpop.permute.xlu0 %1189
    %v1192 = vmul.f32 %v1185, %v1190
    %1194 = vrot.lane.b32.xlu0 %v1192, 32
    %v1195 = vpop.permute.xlu0 %1194
    %v1197 = vadd.f32 %v1187, %v1195
    %v1198 = vtanh.pop %v1197
    %1200 = vrot.lane.b32.xlu0 %v1198, 32
    %v1201 = vpop.permute.xlu0 %1200
    %v1203 = vmul.f32 %v1185, %v1201
    %v1204 = vld [vmem:[%s435] sm:$0xff]
    %v1205 = vpack.c.bf16 %v1203, %v1203
    %1207 = vrot.lane.b32.xlu0 %v1205, 64
    %v1208 = vpop.permute.xlu0 %1207
    %v1210 = vsel %vm195, %v1208, 0
    %1212 = vmatprep.subr.bf16.mxu0 0
    %1213 = vmatpush1.bf16.msra.mxu0 0
    %1214 = vmatprep.subr.bf16.mxu0 0
    %1215 = vmatpush1.bf16.msra.mxu0 0
    %1216 = vmatprep.subr.bf16.mxu0 0
    %1217 = vmatpush1.bf16.msra.mxu0 0
    %1218 = vmatprep.subr.bf16.mxu0 0
    %1219 = vmatpush1.bf16.msra.mxu0 0
    %1220 = vmatprep.subr.bf16.mxu0 0
    %1221 = vmatpush1.bf16.msra.mxu0 0
    %1222 = vmatprep.subr.bf16.mxu0 0
    %1223 = vmatpush1.bf16.msra.mxu0 0
    %1224 = vmatprep.subr.bf16.mxu0 0
    %1225 = vmatpush1.bf16.msra.mxu0 %v990
    %1226 = vmatprep.subr.bf16.mxu0 0
    %1227 = vmatpush1.bf16.msra.mxu0 %v989
    %1228 = vmatprep.subr.bf16.mxu0 0
    %1229 = vmatpush2.bf16.msra.mxu0 0
    %1230 = vmatprep.subr.bf16.mxu0 0
    %1231 = vmatpush2.bf16.msra.mxu0 0
    %1232 = vmatprep.subr.bf16.mxu0 0
    %1233 = vmatpush2.bf16.msra.mxu0 0
    %1234 = vmatprep.subr.bf16.mxu0 0
    %1235 = vmatpush2.bf16.msra.mxu0 0
    %1236 = vmatprep.subr.bf16.mxu0 0
    %1237 = vmatpush2.bf16.msra.mxu0 0
    %1238 = vmatprep.subr.bf16.mxu0 0
    %1239 = vmatpush2.bf16.msra.mxu0 0
    %1240 = vmatprep.subr.bf16.mxu0 0
    %1241 = vmatpush2.bf16.msra.mxu0 0
    %1242 = vmatprep.subr.bf16.mxu0 0
    %1243 = vmatpush2.bf16.msra.mxu0 0
    %1244 = vmatprep.mubr.bf16.mxu0 0
    %1245 = vmatmul.mubr.bf16.gmra.mxu0 %v1210
    %v1246 = vpop.f32.mrf.mxu0
    %v1247 = vadd.f32 0.0, %v1246
    %v1248 = vpop.f32.mrf.mxu0
    %v1249 = vpop.f32.mrf.mxu0
    %v1250 = vpop.f32.mrf.mxu0
    %1251 = vdwg.mxu0
    %v1252 = vadd.f32 %v1204, %v1247
    %v1253 = vxor.u32 %v1252, 2147483648
    %v1254 = vmul.f32 %v1253, 1.442695
    %v1255 = vpow.pop %v1254
    %v1256 = vadd.f32 %v1255, 1.0
    %v1257 = vrcp.pop %v1256
    %v1258 = vmul.f32 1.0, %v1257
    %v1259 = vtanh.pop %v1252
    %v1260 = vmul.f32 %v1258, %v1197
    %1262 = vrot.lane.b32.xlu0 %v1259, 32
    %v1263 = vpop.permute.xlu0 %1262
    %v1265 = vmul.f32 %v1258, %v1263
    %1267 = vrot.lane.b32.xlu0 %v1265, 32
    %v1268 = vpop.permute.xlu0 %1267
    %v1270 = vadd.f32 %v1260, %v1268
    %v1271 = vtanh.pop %v1270
    %1273 = vrot.lane.b32.xlu0 %v1271, 32
    %v1274 = vpop.permute.xlu0 %1273
    %v1276 = vmul.f32 %v1258, %v1274
    %v1277 = vld [vmem:[%s516] sm:$0xff]
    %v1278 = vpack.c.bf16 %v1276, %v1276
    %1280 = vrot.lane.b32.xlu0 %v1278, 64
    %v1281 = vpop.permute.xlu0 %1280
    %v1283 = vsel %vm195, %v1281, 0
    %1285 = vmatprep.subr.bf16.mxu0 0
    %1286 = vmatpush1.bf16.msra.mxu0 0
    %1287 = vmatprep.subr.bf16.mxu0 0
    %1288 = vmatpush1.bf16.msra.mxu0 0
    %1289 = vmatprep.subr.bf16.mxu0 0
    %1290 = vmatpush1.bf16.msra.mxu0 0
    %1291 = vmatprep.subr.bf16.mxu0 0
    %1292 = vmatpush1.bf16.msra.mxu0 0
    %1293 = vmatprep.subr.bf16.mxu0 0
    %1294 = vmatpush1.bf16.msra.mxu0 0
    %1295 = vmatprep.subr.bf16.mxu0 0
    %1296 = vmatpush1.bf16.msra.mxu0 0
    %1297 = vmatprep.subr.bf16.mxu0 0
    %1298 = vmatpush1.bf16.msra.mxu0 %v990
    %1299 = vmatprep.subr.bf16.mxu0 0
    %1300 = vmatpush1.bf16.msra.mxu0 %v989
    %1301 = vmatprep.subr.bf16.mxu0 0
    %1302 = vmatpush2.bf16.msra.mxu0 0
    %1303 = vmatprep.subr.bf16.mxu0 0
    %1304 = vmatpush2.bf16.msra.mxu0 0
    %1305 = vmatprep.subr.bf16.mxu0 0
    %1306 = vmatpush2.bf16.msra.mxu0 0
    %1307 = vmatprep.subr.bf16.mxu0 0
    %1308 = vmatpush2.bf16.msra.mxu0 0
    %1309 = vmatprep.subr.bf16.mxu0 0
    %1310 = vmatpush2.bf16.msra.mxu0 0
    %1311 = vmatprep.subr.bf16.mxu0 0
    %1312 = vmatpush2.bf16.msra.mxu0 0
    %1313 = vmatprep.subr.bf16.mxu0 0
    %1314 = vmatpush2.bf16.msra.mxu0 0
    %1315 = vmatprep.subr.bf16.mxu0 0
    %1316 = vmatpush2.bf16.msra.mxu0 0
    %1317 = vmatprep.mubr.bf16.mxu0 0
    %1318 = vmatmul.mubr.bf16.gmra.mxu0 %v1283
    %v1319 = vpop.f32.mrf.mxu0
    %v1320 = vadd.f32 0.0, %v1319
    %v1321 = vpop.f32.mrf.mxu0
    %v1322 = vpop.f32.mrf.mxu0
    %v1323 = vpop.f32.mrf.mxu0
    %1324 = vdwg.mxu0
    %v1325 = vadd.f32 %v1277, %v1320
    %v1326 = vxor.u32 %v1325, 2147483648
    %v1327 = vmul.f32 %v1326, 1.442695
    %v1328 = vpow.pop %v1327
    %v1329 = vadd.f32 %v1328, 1.0
    %v1330 = vrcp.pop %v1329
    %v1331 = vmul.f32 1.0, %v1330
    %v1332 = vtanh.pop %v1325
    %v1333 = vmul.f32 %v1331, %v1270
    %1335 = vrot.lane.b32.xlu0 %v1332, 32
    %v1336 = vpop.permute.xlu0 %1335
    %v1338 = vmul.f32 %v1331, %v1336
    %1340 = vrot.lane.b32.xlu0 %v1338, 32
    %v1341 = vpop.permute.xlu0 %1340
    %v1343 = vadd.f32 %v1333, %v1341
    %v1344 = vtanh.pop %v1343
    %1346 = vrot.lane.b32.xlu0 %v1344, 32
    %v1347 = vpop.permute.xlu0 %1346
    %v1349 = vmul.f32 %v1331, %v1347
    %v1350 = vld [vmem:[%s597] sm:$0xff]
    %v1351 = vpack.c.bf16 %v1349, %v1349
    %1353 = vrot.lane.b32.xlu0 %v1351, 64
    %v1354 = vpop.permute.xlu0 %1353
    %v1356 = vsel %vm195, %v1354, 0
    %1358 = vmatprep.subr.bf16.mxu0 0
    %1359 = vmatpush1.bf16.msra.mxu0 0
    %1360 = vmatprep.subr.bf16.mxu0 0
    %1361 = vmatpush1.bf16.msra.mxu0 0
    %1362 = vmatprep.subr.bf16.mxu0 0
    %1363 = vmatpush1.bf16.msra.mxu0 0
    %1364 = vmatprep.subr.bf16.mxu0 0
    %1365 = vmatpush1.bf16.msra.mxu0 0
    %1366 = vmatprep.subr.bf16.mxu0 0
    %1367 = vmatpush1.bf16.msra.mxu0 0
    %1368 = vmatprep.subr.bf16.mxu0 0
    %1369 = vmatpush1.bf16.msra.mxu0 0
    %1370 = vmatprep.subr.bf16.mxu0 0
    %1371 = vmatpush1.bf16.msra.mxu0 %v990
    %1372 = vmatprep.subr.bf16.mxu0 0
    %1373 = vmatpush1.bf16.msra.mxu0 %v989
    %1374 = vmatprep.subr.bf16.mxu0 0
    %1375 = vmatpush2.bf16.msra.mxu0 0
    %1376 = vmatprep.subr.bf16.mxu0 0
    %1377 = vmatpush2.bf16.msra.mxu0 0
    %1378 = vmatprep.subr.bf16.mxu0 0
    %1379 = vmatpush2.bf16.msra.mxu0 0
    %1380 = vmatprep.subr.bf16.mxu0 0
    %1381 = vmatpush2.bf16.msra.mxu0 0
    %1382 = vmatprep.subr.bf16.mxu0 0
    %1383 = vmatpush2.bf16.msra.mxu0 0
    %1384 = vmatprep.subr.bf16.mxu0 0
    %1385 = vmatpush2.bf16.msra.mxu0 0
    %1386 = vmatprep.subr.bf16.mxu0 0
    %1387 = vmatpush2.bf16.msra.mxu0 0
    %1388 = vmatprep.subr.bf16.mxu0 0
    %1389 = vmatpush2.bf16.msra.mxu0 0
    %1390 = vmatprep.mubr.bf16.mxu0 0
    %1391 = vmatmul.mubr.bf16.gmra.mxu0 %v1356
    %v1392 = vpop.f32.mrf.mxu0
    %v1393 = vadd.f32 0.0, %v1392
    %v1394 = vpop.f32.mrf.mxu0
    %v1395 = vpop.f32.mrf.mxu0
    %v1396 = vpop.f32.mrf.mxu0
    %1397 = vdwg.mxu0
    %v1398 = vadd.f32 %v1350, %v1393
    %v1399 = vxor.u32 %v1398, 2147483648
    %v1400 = vmul.f32 %v1399, 1.442695
    %v1401 = vpow.pop %v1400
    %v1402 = vadd.f32 %v1401, 1.0
    %v1403 = vrcp.pop %v1402
    %v1404 = vmul.f32 1.0, %v1403
    %v1405 = vtanh.pop %v1398
    %v1406 = vmul.f32 %v1404, %v1343
    %1408 = vrot.lane.b32.xlu0 %v1405, 32
    %v1409 = vpop.permute.xlu0 %1408
    %v1411 = vmul.f32 %v1404, %v1409
    %1413 = vrot.lane.b32.xlu0 %v1411, 32
    %v1414 = vpop.permute.xlu0 %1413
    %v1416 = vadd.f32 %v1406, %v1414
    %v1417 = vtanh.pop %v1416
    %1419 = vrot.lane.b32.xlu0 %v1417, 32
    %v1420 = vpop.permute.xlu0 %1419
    %v1422 = vmul.f32 %v1404, %v1420
    %v1423 = vld [vmem:[%s678] sm:$0xff]
    %v1424 = vpack.c.bf16 %v1422, %v1422
    %1426 = vrot.lane.b32.xlu0 %v1424, 64
    %v1427 = vpop.permute.xlu0 %1426
    %v1429 = vsel %vm195, %v1427, 0
    %1431 = vmatprep.subr.bf16.mxu0 0
    %1432 = vmatpush1.bf16.msra.mxu0 0
    %1433 = vmatprep.subr.bf16.mxu0 0
    %1434 = vmatpush1.bf16.msra.mxu0 0
    %1435 = vmatprep.subr.bf16.mxu0 0
    %1436 = vmatpush1.bf16.msra.mxu0 0
    %1437 = vmatprep.subr.bf16.mxu0 0
    %1438 = vmatpush1.bf16.msra.mxu0 0
    %1439 = vmatprep.subr.bf16.mxu0 0
    %1440 = vmatpush1.bf16.msra.mxu0 0
    %1441 = vmatprep.subr.bf16.mxu0 0
    %1442 = vmatpush1.bf16.msra.mxu0 0
    %1443 = vmatprep.subr.bf16.mxu0 0
    %1444 = vmatpush1.bf16.msra.mxu0 %v990
    %1445 = vmatprep.subr.bf16.mxu0 0
    %1446 = vmatpush1.bf16.msra.mxu0 %v989
    %1447 = vmatprep.subr.bf16.mxu0 0
    %1448 = vmatpush2.bf16.msra.mxu0 0
    %1449 = vmatprep.subr.bf16.mxu0 0
    %1450 = vmatpush2.bf16.msra.mxu0 0
    %1451 = vmatprep.subr.bf16.mxu0 0
    %1452 = vmatpush2.bf16.msra.mxu0 0
    %1453 = vmatprep.subr.bf16.mxu0 0
    %1454 = vmatpush2.bf16.msra.mxu0 0
    %1455 = vmatprep.subr.bf16.mxu0 0
    %1456 = vmatpush2.bf16.msra.mxu0 0
    %1457 = vmatprep.subr.bf16.mxu0 0
    %1458 = vmatpush2.bf16.msra.mxu0 0
    %1459 = vmatprep.subr.bf16.mxu0 0
    %1460 = vmatpush2.bf16.msra.mxu0 0
    %1461 = vmatprep.subr.bf16.mxu0 0
    %1462 = vmatpush2.bf16.msra.mxu0 0
    %1463 = vmatprep.mubr.bf16.mxu0 0
    %1464 = vmatmul.mubr.bf16.gmra.mxu0 %v1429
    %v1465 = vpop.f32.mrf.mxu0
    %v1466 = vadd.f32 0.0, %v1465
    %v1467 = vpop.f32.mrf.mxu0
    %v1468 = vpop.f32.mrf.mxu0
    %v1469 = vpop.f32.mrf.mxu0
    %1470 = vdwg.mxu0
    %v1471 = vadd.f32 %v1423, %v1466
    %v1472 = vxor.u32 %v1471, 2147483648
    %v1473 = vmul.f32 %v1472, 1.442695
    %v1474 = vpow.pop %v1473
    %v1475 = vadd.f32 %v1474, 1.0
    %v1476 = vrcp.pop %v1475
    %v1477 = vmul.f32 1.0, %v1476
    %v1478 = vtanh.pop %v1471
    %v1479 = vmul.f32 %v1477, %v1416
    %1481 = vrot.lane.b32.xlu0 %v1478, 32
    %v1482 = vpop.permute.xlu0 %1481
    %v1484 = vmul.f32 %v1477, %v1482
    %1486 = vrot.lane.b32.xlu0 %v1484, 32
    %v1487 = vpop.permute.xlu0 %1486
    %v1489 = vadd.f32 %v1479, %v1487
    %v1490 = vtanh.pop %v1489
    %1492 = vrot.lane.b32.xlu0 %v1490, 32
    %v1493 = vpop.permute.xlu0 %1492
    %v1495 = vmul.f32 %v1477, %v1493
    %v1496 = vld [vmem:[%s759] sm:$0xff]
    %v1497 = vpack.c.bf16 %v1495, %v1495
    %1499 = vrot.lane.b32.xlu0 %v1497, 64
    %v1500 = vpop.permute.xlu0 %1499
    %v1502 = vsel %vm195, %v1500, 0
    %1504 = vmatprep.subr.bf16.mxu0 0
    %1505 = vmatpush1.bf16.msra.mxu0 0
    %1506 = vmatprep.subr.bf16.mxu0 0
    %1507 = vmatpush1.bf16.msra.mxu0 0
    %1508 = vmatprep.subr.bf16.mxu0 0
    %1509 = vmatpush1.bf16.msra.mxu0 0
    %1510 = vmatprep.subr.bf16.mxu0 0
    %1511 = vmatpush1.bf16.msra.mxu0 0
    %1512 = vmatprep.subr.bf16.mxu0 0
    %1513 = vmatpush1.bf16.msra.mxu0 0
    %1514 = vmatprep.subr.bf16.mxu0 0
    %1515 = vmatpush1.bf16.msra.mxu0 0
    %1516 = vmatprep.subr.bf16.mxu0 0
    %1517 = vmatpush1.bf16.msra.mxu0 %v990
    %1518 = vmatprep.subr.bf16.mxu0 0
    %1519 = vmatpush1.bf16.msra.mxu0 %v989
    %1520 = vmatprep.subr.bf16.mxu0 0
    %1521 = vmatpush2.bf16.msra.mxu0 0
    %1522 = vmatprep.subr.bf16.mxu0 0
    %1523 = vmatpush2.bf16.msra.mxu0 0
    %1524 = vmatprep.subr.bf16.mxu0 0
    %1525 = vmatpush2.bf16.msra.mxu0 0
    %1526 = vmatprep.subr.bf16.mxu0 0
    %1527 = vmatpush2.bf16.msra.mxu0 0
    %1528 = vmatprep.subr.bf16.mxu0 0
    %1529 = vmatpush2.bf16.msra.mxu0 0
    %1530 = vmatprep.subr.bf16.mxu0 0
    %1531 = vmatpush2.bf16.msra.mxu0 0
    %1532 = vmatprep.subr.bf16.mxu0 0
    %1533 = vmatpush2.bf16.msra.mxu0 0
    %1534 = vmatprep.subr.bf16.mxu0 0
    %1535 = vmatpush2.bf16.msra.mxu0 0
    %1536 = vmatprep.mubr.bf16.mxu0 0
    %1537 = vmatmul.mubr.bf16.gmra.mxu0 %v1502
    %v1538 = vpop.f32.mrf.mxu0
    %v1539 = vadd.f32 0.0, %v1538
    %v1540 = vpop.f32.mrf.mxu0
    %v1541 = vpop.f32.mrf.mxu0
    %v1542 = vpop.f32.mrf.mxu0
    %1543 = vdwg.mxu0
    %v1544 = vadd.f32 %v1496, %v1539
    %v1545 = vxor.u32 %v1544, 2147483648
    %v1546 = vmul.f32 %v1545, 1.442695
    %v1547 = vpow.pop %v1546
    %v1548 = vadd.f32 %v1547, 1.0
    %v1549 = vrcp.pop %v1548
    %v1550 = vmul.f32 1.0, %v1549
    %v1551 = vtanh.pop %v1544
    %v1552 = vmul.f32 %v1550, %v1489
    %1554 = vrot.lane.b32.xlu0 %v1551, 32
    %v1555 = vpop.permute.xlu0 %1554
    %v1557 = vmul.f32 %v1550, %v1555
    %1559 = vrot.lane.b32.xlu0 %v1557, 32
    %v1560 = vpop.permute.xlu0 %1559
    %v1562 = vadd.f32 %v1552, %v1560
    %v1563 = vtanh.pop %v1562
    %1565 = vrot.lane.b32.xlu0 %v1563, 32
    %v1566 = vpop.permute.xlu0 %1565
    %v1568 = vmul.f32 %v1550, %v1566
    %v1569 = vld [vmem:[%s7] sm:$0x1]
    %v1571 = vlaneseq
    %v1572 = vshrl.u32 %v1571, 7
    %v1573 = vsub.s32 0, %v1572
    %v1574 = vrot.slane %v1569, %v1573
    %1575 = vrot.lane.b32.xlu0 %v1574, 64
    %v1576 = vpop.permute.xlu0 %1575
    %v1578 = vmul.f32 %v1568, %v1576
    %1580 = vrot.lane.b32.xlu0 %v1578, 64
    %v1581 = vpop.permute.xlu0 %1580
    %v1583 = vsel %vm195, %v1581, 0.0
    %1584 = vadd.xlane.f32.xlu0 %v1583
    %v1585 = vpop.xlane.xlu0 %1584
    %v1586 = vld [vmem:[#allocation4] sm:$0x1]
    %v1588 = vlaneseq
    %v1589 = vshrl.u32 %v1588, 7
    %v1590 = vsub.s32 0, %v1589
    %v1591 = vrot.slane %v1586, %v1590
    %v1593 = vadd.f32 %v1585, %v1591
    %vm1594 = vcmask 7168
    %1595 = vst.msk [vmem:[%s9] sm:$0xff] %vm1594, %v1593
    // Predicated region
    $region42: #{tpu_custom_call.1} parent=1 // pred_check
      _
    $region43: #{tpu_custom_call.1} parent=1 // pred_check_branch
      %1597 = sbr.rel (0) target = $region45
    $region44: #{tpu_custom_call.1} parent=1 // pred_region
      _
    $region45: #{tpu_custom_call.1} parent=1 // pred_fallthru
      _
    // Predicated region
    $region46: #{tpu_custom_call.1} parent=1 // pred_check
      _
    $region47: #{tpu_custom_call.1} parent=1 // pred_check_branch
      %1599 = sbr.rel (0) target = $region49
    $region48: #{tpu_custom_call.1} parent=1 // pred_region
      _
    $region49: #{tpu_custom_call.1} parent=1 // pred_fallthru
      _
    %1600 = vsyncpa [#allocation6], 1

</llo_original>
